<compile_context>
chip_gen: v7x
topology: tpu7x:2x2x1
jax: 0.10.0
libtpu: 0.0.40
codegen_flags: <defaults>
</compile_context>

<pallas_src>
import jax
import jax.numpy as jnp
from jax.experimental import pallas as pl
from jax.experimental.pallas import tpu as pltpu


def make_ffnn_forward(emb_table, v_w, v_b, w_w, w_b, *, seq_len, tile_b=None):
    """Build a batched FFNN forward fn.  All weight fusion/padding happens ONCE here.

    emb_table: [vocab, D]   v_w: [D, H]   v_b: [1, H]   w_w: [H, n_cls]   w_b: [1, n_cls]
    Returned fn maps word_indices [B, seq_len] int32 -> log-probs [B, n_cls] float32.
    """
    vocab, D = emb_table.shape
    H = v_w.shape[1]
    n_cls = w_w.shape[1]

    f32 = jnp.float32
    cdtype = jnp.bfloat16                       # MXU operand dtype

    kind = jax.devices()[0].device_kind.lower()
    # v5 VPUs have no bf16 elementwise path -> accumulate the one-hot counts in f32 there.
    acc_dtype = f32 if "v5" in kind else cdtype
    # v7x has 2 TensorCores per chip -> keep >= 2 batch tiles; single-TC chips use 1 tile.
    n_cores = 2 if ("v7" in kind or "7x" in kind) else 1

    VP = pl.cdiv(vocab, 128) * 128              # one-hot lanes / fused-weight rows
    OP = 128                                    # lane-dense output slab width

    # ---- affine collapse (exact in real arithmetic; ReLU output is dead code in the
    #      original forward).  Computed in f32, cast to bf16 once. ----
    M = (emb_table.astype(f32) @ v_w.astype(f32) @ w_w.astype(f32)) / float(seq_len)
    b_eff = v_b.astype(f32) @ w_w.astype(f32) + w_b.astype(f32)          # [1, n_cls]

    M_p = jnp.zeros((VP, OP), cdtype).at[:vocab, :n_cls].set(M.astype(cdtype))
    # Class-pad mask folded into the bias: pad columns come out as 0 @ 0 + (-1e30).
    b_p = jnp.full((1, OP), -1e30, f32).at[:, :n_cls].set(b_eff)

    def kernel(idx_ref, m_ref, b_ref, out_ref):
        tb, s = idx_ref.shape
        vp = m_ref.shape[0]
        idx = idx_ref[...]                                               # [tb, seq] int32

        # Embedding gather + sentence mean fused as one MXU matmul:
        #   counts[b, v] = #{t : idx[b, t] == v};   logits = counts @ M + b_eff
        vocab_iota = jax.lax.broadcasted_iota(jnp.int32, (tb, vp), 1)
        counts = jnp.zeros((tb, vp), acc_dtype)
        for t in range(s):                                               # seq small & static
            counts = counts + (idx[:, t:t + 1] == vocab_iota).astype(acc_dtype)

        logits = jnp.dot(counts.astype(cdtype), m_ref[...],
                         preferred_element_type=f32) + b_ref[...]        # [tb, OP] f32

        # log_softmax; pad columns already at -1e30 via the folded bias.
        mx = jnp.max(logits, axis=-1, keepdims=True)
        shifted = logits - mx
        lse = jnp.log(jnp.sum(jnp.exp(shifted), axis=-1, keepdims=True))
        out_ref[...] = shifted - lse

    @jax.jit
    def forward(word_indices):
        B, s = word_indices.shape
        assert s == seq_len, "seq length is folded into the fused weights at build time"

        tb = tile_b
        if tb is None:
            tb = pl.cdiv(pl.cdiv(B, n_cores), 8) * 8     # sublane-aligned batch tile
        BP = pl.cdiv(B, tb) * tb

        idx_p = jnp.zeros((BP, s), jnp.int32).at[:B].set(word_indices.astype(jnp.int32))

        out = pl.pallas_call(
            kernel,
            out_shape=jax.ShapeDtypeStruct((BP, OP), f32),
            grid=(BP // tb,),
            in_specs=[
                pl.BlockSpec((tb, s), lambda i: (i, 0)),     # word indices (per batch tile)
                pl.BlockSpec((VP, OP), lambda i: (0, 0)),    # fused weight (resident)
                pl.BlockSpec((1, OP), lambda i: (0, 0)),     # fused bias + class mask
            ],
            out_specs=pl.BlockSpec((tb, OP), lambda i: (i, 0)),
            compiler_params=pltpu.CompilerParams(
                dimension_semantics=("parallel",)),          # v7x: batch tiles over 2 TCs
        )(idx_p, M_p, b_p)

        return out[:B, :n_cls]

    return forward


if __name__ == "__main__":
    key = jax.random.PRNGKey(0)
    k_emb, k_idx, kv, kvb, kw, kwb = jax.random.split(key, 6)

    vocab, emb_dim, hidden, n_cls = 50, 64, 100, 2
    batch, seq = 256, 8          # batch of sentences -> full MXU M-dim per grid step

    # Deterministic "pretrained" embedding table (bf16 storage) + sentences of word ids.
    emb_table = jax.random.normal(k_emb, (vocab, emb_dim), jnp.float32).astype(jnp.bfloat16)
    word_indices = jax.random.randint(k_idx, (batch, seq), 0, vocab)

    def xavier_uniform(k, out_f, in_f):
        bound = (6.0 / (in_f + out_f)) ** 0.5
        return jax.random.uniform(k, (out_f, in_f), jnp.float32, -bound, bound)

    # PyTorch layout [out_features, in_features], transposed for the kernel; f32 params
    # (fusion + bf16 cast happens once inside make_ffnn_forward).
    V_w = xavier_uniform(kv, hidden, emb_dim).T                          # [D, H]
    V_b = jax.random.uniform(kvb, (1, hidden), jnp.float32,
                             -1.0 / emb_dim ** 0.5, 1.0 / emb_dim ** 0.5)
    W_w = xavier_uniform(kw, n_cls, hidden).T                            # [H, 2]
    W_b = jax.random.uniform(kwb, (1, n_cls), jnp.float32,
                             -1.0 / hidden ** 0.5, 1.0 / hidden ** 0.5)

    forward = make_ffnn_forward(emb_table, V_w, V_b, W_w, W_b, seq_len=seq)
    out = jax.block_until_ready(forward(word_indices))
    assert out.shape == (batch, n_cls)

    f32 = jnp.float32

    # 1) Tight mechanical check: pure-JAX recomputation with the SAME fused bf16 weight.
    counts = (word_indices[:, :, None] == jnp.arange(vocab)[None, None, :]).astype(f32).sum(1)
    M_fused = ((emb_table.astype(f32) @ V_w @ W_w) / seq).astype(jnp.bfloat16).astype(f32)
    b_eff = V_b @ W_w + W_b
    ref_fused = jax.nn.log_softmax(counts @ M_fused + b_eff, axis=-1)
    assert jnp.allclose(out, ref_fused, atol=1e-4, rtol=1e-4), \
        float(jnp.max(jnp.abs(out - ref_fused)))

    # 2) Spec check vs the staged f32 forward of the original module (W on the PRE-ReLU
    #    hidden).  Looser tolerance: the kernel's single bf16 rounding of the fused weight
    #    moves rounding points relative to the staged computation.
    emb = jnp.take(emb_table.astype(f32), word_indices, axis=0)          # [B, seq, D]
    avg = emb.mean(axis=1)                                               # [B, D]
    hid = avg @ V_w + V_b
    logits = hid @ W_W if False else hid @ W_w + W_b                     # W on pre-ReLU hidden
    ref = jax.nn.log_softmax(logits, axis=-1)
    assert jnp.allclose(out, ref, atol=2e-2, rtol=1e-2), \
        float(jnp.max(jnp.abs(out - ref)))

    print("KERNEL_OK")
</pallas_src>

<mosaic_0001>
module attributes {stable_mosaic.version = 11 : i64} {
  func.func @kernel(%arg0: i32, %arg1: memref<256x8xi32, #tpu.memory_space<vmem>>, %arg2: memref<128x128xbf16, #tpu.memory_space<vmem>>, %arg3: memref<1x128xf32, #tpu.memory_space<vmem>>, %arg4: memref<256x128xf32, #tpu.memory_space<vmem>>) attributes {dimension_semantics = [#tpu.dimension_semantics<parallel>], iteration_bounds = array<i64: 1>, scalar_prefetch = 0 : i64, scratch_operands = 0 : i64, tpu.core_type = #tpu.core_type<tc>, window_params = [{transform_indices = @transform_0, window_bounds = array<i64: 256, 8>}, {pipeline_mode = #tpu.pipeline_mode<synchronous>, transform_indices = @transform_1, window_bounds = array<i64: 128, 128>}, {pipeline_mode = #tpu.pipeline_mode<synchronous>, transform_indices = @transform_2, window_bounds = array<i64: 1, 128>}, {transform_indices = @transform_3, window_bounds = array<i64: 256, 128>}]} {
    %c0 = arith.constant 0 : index
    %c0_0 = arith.constant 0 : index
    %0 = vector.load %arg1[%c0, %c0_0] : memref<256x8xi32, #tpu.memory_space<vmem>>, vector<256x8xi32>
    %1 = tpu.iota {dimensions = array<i32: 1>} : vector<256x128xi32>
    %cst = arith.constant 0.000000e+00 : bf16
    %2 = vector.broadcast %cst : bf16 to vector<256x128xbf16>
    %3 = vector.extract_strided_slice %0 {offsets = [0, 0], sizes = [256, 1], strides = [1, 1]} : vector<256x8xi32> to vector<256x1xi32>
    %4 = vector.broadcast %3 : vector<256x1xi32> to vector<256x128xi32>
    %5 = arith.cmpi eq, %4, %1 : vector<256x128xi32>
    %6 = arith.extui %5 : vector<256x128xi1> to vector<256x128xi32>
    %7 = arith.sitofp %6 : vector<256x128xi32> to vector<256x128xf32>
    %8 = arith.truncf %7 : vector<256x128xf32> to vector<256x128xbf16>
    %9 = arith.addf %2, %8 : vector<256x128xbf16>
    %10 = vector.extract_strided_slice %0 {offsets = [0, 1], sizes = [256, 1], strides = [1, 1]} : vector<256x8xi32> to vector<256x1xi32>
    %11 = vector.broadcast %10 : vector<256x1xi32> to vector<256x128xi32>
    %12 = arith.cmpi eq, %11, %1 : vector<256x128xi32>
    %13 = arith.extui %12 : vector<256x128xi1> to vector<256x128xi32>
    %14 = arith.sitofp %13 : vector<256x128xi32> to vector<256x128xf32>
    %15 = arith.truncf %14 : vector<256x128xf32> to vector<256x128xbf16>
    %16 = arith.addf %9, %15 : vector<256x128xbf16>
    %17 = vector.extract_strided_slice %0 {offsets = [0, 2], sizes = [256, 1], strides = [1, 1]} : vector<256x8xi32> to vector<256x1xi32>
    %18 = vector.broadcast %17 : vector<256x1xi32> to vector<256x128xi32>
    %19 = arith.cmpi eq, %18, %1 : vector<256x128xi32>
    %20 = arith.extui %19 : vector<256x128xi1> to vector<256x128xi32>
    %21 = arith.sitofp %20 : vector<256x128xi32> to vector<256x128xf32>
    %22 = arith.truncf %21 : vector<256x128xf32> to vector<256x128xbf16>
    %23 = arith.addf %16, %22 : vector<256x128xbf16>
    %24 = vector.extract_strided_slice %0 {offsets = [0, 3], sizes = [256, 1], strides = [1, 1]} : vector<256x8xi32> to vector<256x1xi32>
    %25 = vector.broadcast %24 : vector<256x1xi32> to vector<256x128xi32>
    %26 = arith.cmpi eq, %25, %1 : vector<256x128xi32>
    %27 = arith.extui %26 : vector<256x128xi1> to vector<256x128xi32>
    %28 = arith.sitofp %27 : vector<256x128xi32> to vector<256x128xf32>
    %29 = arith.truncf %28 : vector<256x128xf32> to vector<256x128xbf16>
    %30 = arith.addf %23, %29 : vector<256x128xbf16>
    %31 = vector.extract_strided_slice %0 {offsets = [0, 4], sizes = [256, 1], strides = [1, 1]} : vector<256x8xi32> to vector<256x1xi32>
    %32 = vector.broadcast %31 : vector<256x1xi32> to vector<256x128xi32>
    %33 = arith.cmpi eq, %32, %1 : vector<256x128xi32>
    %34 = arith.extui %33 : vector<256x128xi1> to vector<256x128xi32>
    %35 = arith.sitofp %34 : vector<256x128xi32> to vector<256x128xf32>
    %36 = arith.truncf %35 : vector<256x128xf32> to vector<256x128xbf16>
    %37 = arith.addf %30, %36 : vector<256x128xbf16>
    %38 = vector.extract_strided_slice %0 {offsets = [0, 5], sizes = [256, 1], strides = [1, 1]} : vector<256x8xi32> to vector<256x1xi32>
    %39 = vector.broadcast %38 : vector<256x1xi32> to vector<256x128xi32>
    %40 = arith.cmpi eq, %39, %1 : vector<256x128xi32>
    %41 = arith.extui %40 : vector<256x128xi1> to vector<256x128xi32>
    %42 = arith.sitofp %41 : vector<256x128xi32> to vector<256x128xf32>
    %43 = arith.truncf %42 : vector<256x128xf32> to vector<256x128xbf16>
    %44 = arith.addf %37, %43 : vector<256x128xbf16>
    %45 = vector.extract_strided_slice %0 {offsets = [0, 6], sizes = [256, 1], strides = [1, 1]} : vector<256x8xi32> to vector<256x1xi32>
    %46 = vector.broadcast %45 : vector<256x1xi32> to vector<256x128xi32>
    %47 = arith.cmpi eq, %46, %1 : vector<256x128xi32>
    %48 = arith.extui %47 : vector<256x128xi1> to vector<256x128xi32>
    %49 = arith.sitofp %48 : vector<256x128xi32> to vector<256x128xf32>
    %50 = arith.truncf %49 : vector<256x128xf32> to vector<256x128xbf16>
    %51 = arith.addf %44, %50 : vector<256x128xbf16>
    %52 = vector.extract_strided_slice %0 {offsets = [0, 7], sizes = [256, 1], strides = [1, 1]} : vector<256x8xi32> to vector<256x1xi32>
    %53 = vector.broadcast %52 : vector<256x1xi32> to vector<256x128xi32>
    %54 = arith.cmpi eq, %53, %1 : vector<256x128xi32>
    %55 = arith.extui %54 : vector<256x128xi1> to vector<256x128xi32>
    %56 = arith.sitofp %55 : vector<256x128xi32> to vector<256x128xf32>
    %57 = arith.truncf %56 : vector<256x128xf32> to vector<256x128xbf16>
    %58 = arith.addf %51, %57 : vector<256x128xbf16>
    %c0_1 = arith.constant 0 : index
    %c0_2 = arith.constant 0 : index
    %59 = vector.load %arg2[%c0_1, %c0_2] : memref<128x128xbf16, #tpu.memory_space<vmem>>, vector<128x128xbf16>
    %cst_3 = arith.constant dense<0.000000e+00> : vector<256x128xf32>
    %60 = tpu.matmul %58, %59, %cst_3 {dimension_numbers = #tpu.dot_dimension_numbers<[1], [0], [0], [1], [0, 0, 1, 1], [], []>} : vector<256x128xbf16>, vector<128x128xbf16>, vector<256x128xf32> -> vector<256x128xf32>
    %c0_4 = arith.constant 0 : index
    %c0_5 = arith.constant 0 : index
    %61 = vector.load %arg3[%c0_4, %c0_5] : memref<1x128xf32, #tpu.memory_space<vmem>>, vector<1x128xf32>
    %62 = vector.broadcast %61 : vector<1x128xf32> to vector<256x128xf32>
    %63 = arith.addf %60, %62 : vector<256x128xf32>
    %cst_6 = arith.constant dense<0xFF800000> : vector<256xf32>
    %64 = vector.multi_reduction <maximumf>, %63, %cst_6 [1] : vector<256x128xf32> to vector<256xf32>
    %65 = vector.shape_cast %64 : vector<256xf32> to vector<256x1xf32>
    %66 = vector.broadcast %65 : vector<256x1xf32> to vector<256x128xf32>
    %67 = arith.subf %63, %66 : vector<256x128xf32>
    %68 = math.exp %67 : vector<256x128xf32>
    %cst_7 = arith.constant dense<0.000000e+00> : vector<256xf32>
    %69 = vector.multi_reduction <add>, %68, %cst_7 [1] : vector<256x128xf32> to vector<256xf32>
    %70 = vector.shape_cast %69 : vector<256xf32> to vector<256x1xf32>
    %71 = math.log %70 : vector<256x1xf32>
    %72 = vector.broadcast %71 : vector<256x1xf32> to vector<256x128xf32>
    %73 = arith.subf %67, %72 : vector<256x128xf32>
    %c0_8 = arith.constant 0 : index
    %c0_9 = arith.constant 0 : index
    %74 = vector.load %arg4[%c0_8, %c0_9] : memref<256x128xf32, #tpu.memory_space<vmem>>, vector<256x128xf32>
    tpu.vector_store %arg4[%c0_8, %c0_9], %73 {strides = array<i32>} : memref<256x128xf32, #tpu.memory_space<vmem>>, vector<256x128xf32>,
    return
  }
  func.func @transform_0(%arg0: i32) -> (i32, i32) {
    %c0_i32 = arith.constant 0 : i32
    %c0_i32_0 = arith.constant 0 : i32
    return %arg0, %c0_i32 : i32, i32
  }
  func.func @transform_1(%arg0: i32) -> (i32, i32) {
    %c0_i32 = arith.constant 0 : i32
    %c0_i32_0 = arith.constant 0 : i32
    %c0_i32_1 = arith.constant 0 : i32
    return %c0_i32, %c0_i32_0 : i32, i32
  }
  func.func @transform_2(%arg0: i32) -> (i32, i32) {
    %c0_i32 = arith.constant 0 : i32
    %c0_i32_0 = arith.constant 0 : i32
    %c0_i32_1 = arith.constant 0 : i32
    return %c0_i32, %c0_i32_0 : i32, i32
  }
  func.func @transform_3(%arg0: i32) -> (i32, i32) {
    %c0_i32 = arith.constant 0 : i32
    %c0_i32_0 = arith.constant 0 : i32
    return %arg0, %c0_i32 : i32, i32
  }
}

</mosaic_0001>

<llo_original>
// kernel: forward.1
$region0: #{forward.1}
  #allocation0 [shape = 'u32[]', space=smem, size = 0x4, offset = 0x4, fixed_abs, tag = 'smem constant byte address 0x4 - core index']
  #allocation1 [shape = 'u32[144,128]{1,0:T(1,128)}', space=vmem, size = 0x12000, scoped, tag = 'internal scratch']
  %s0 = inlined_call_operand.vmem [shape: s32[256,8], index: 0, kind: input, shape index: {}]
  %s1 = inlined_call_operand.vmem [shape: bf16[128,128], index: 1, kind: input, shape index: {}]
  %s2 = inlined_call_operand.vmem [shape: f32[1,128], index: 2, kind: input, shape index: {}]
  %s3 = inlined_call_operand.vmem [shape: f32[256,128], index: 3, kind: output, shape index: {}]
  %s4 = sld [smem:[#allocation0]]
  $region22: #{forward.1} parent=0
    _
  %s6 = ssub.s32 1, %s4
  %s7 = scalar_select 0, %s6, %s4
  // Predicated region
  $region2: #{forward.1} parent=0 // pred_check
    _
  $region3: #{forward.1} parent=0 // pred_check_branch
    %9 = sbr.rel (0) target = $region5
  $region4: #{forward.1} parent=0 // pred_region
    _
  $region5: #{forward.1} parent=0 // pred_fallthru
    _
  // Predicated region
  $region6: #{forward.1} parent=0 // pred_check
    _
  $region7: #{forward.1} parent=0 // pred_check_branch
    %11 = sbr.rel (0) target = $region9
  $region8: #{forward.1} parent=0 // pred_region
    _
  $region9: #{forward.1} parent=0 // pred_fallthru
    _
  // Predicated region
  $region10: #{forward.1} parent=0 // pred_check
    _
  $region11: #{forward.1} parent=0 // pred_check_branch
    %13 = sbr.rel (0) target = $region13
  $region12: #{forward.1} parent=0 // pred_region
    _
  $region13: #{forward.1} parent=0 // pred_fallthru
    _
  %v15 = vld [vmem:[%s0] sm:$0xff]
  %v16 = vld [vmem:[%s0 + $0x8] sm:$0xff]
  %v17 = vld [vmem:[%s0 + $0x10] sm:$0xff]
  %v18 = vld [vmem:[%s0 + $0x18] sm:$0xff]
  %v19 = vld [vmem:[%s0 + $0x20] sm:$0xff]
  %v20 = vld [vmem:[%s0 + $0x28] sm:$0xff]
  %v21 = vld [vmem:[%s0 + $0x30] sm:$0xff]
  %v22 = vld [vmem:[%s0 + $0x38] sm:$0xff]
  %v23 = vld [vmem:[%s0 + $0x40] sm:$0xff]
  %v24 = vld [vmem:[%s0 + $0x48] sm:$0xff]
  %v25 = vld [vmem:[%s0 + $0x50] sm:$0xff]
  %v26 = vld [vmem:[%s0 + $0x58] sm:$0xff]
  %v27 = vld [vmem:[%s0 + $0x60] sm:$0xff]
  %v28 = vld [vmem:[%s0 + $0x68] sm:$0xff]
  %v29 = vld [vmem:[%s0 + $0x70] sm:$0xff]
  %v30 = vld [vmem:[%s0 + $0x78] sm:$0xff]
  %v31 = vld [vmem:[%s0 + $0x80] sm:$0xff]
  %v32 = vld [vmem:[%s0 + $0x88] sm:$0xff]
  %v33 = vld [vmem:[%s0 + $0x90] sm:$0xff]
  %v34 = vld [vmem:[%s0 + $0x98] sm:$0xff]
  %v35 = vld [vmem:[%s0 + $0xa0] sm:$0xff]
  %v36 = vld [vmem:[%s0 + $0xa8] sm:$0xff]
  %v37 = vld [vmem:[%s0 + $0xb0] sm:$0xff]
  %v38 = vld [vmem:[%s0 + $0xb8] sm:$0xff]
  %v39 = vld [vmem:[%s0 + $0xc0] sm:$0xff]
  %v40 = vld [vmem:[%s0 + $0xc8] sm:$0xff]
  %v41 = vld [vmem:[%s0 + $0xd0] sm:$0xff]
  %v42 = vld [vmem:[%s0 + $0xd8] sm:$0xff]
  %v43 = vld [vmem:[%s0 + $0xe0] sm:$0xff]
  %v44 = vld [vmem:[%s0 + $0xe8] sm:$0xff]
  %v45 = vld [vmem:[%s0 + $0xf0] sm:$0xff]
  %v46 = vld [vmem:[%s0 + $0xf8] sm:$0xff]
  %v47 = vlaneseq
  %v48 = vand.u32 %v47, 127
  %49 = vset.pattern.permute.xlu0 0
  %50 = vperm.xlu0 %49, %v15
  %v51 = vpop.permute.xlu0 %50
  %52 = vset.pattern.permute.xlu0 0
  %53 = vperm.xlu0 %52, %v16
  %v54 = vpop.permute.xlu0 %53
  %55 = vset.pattern.permute.xlu0 0
  %56 = vperm.xlu0 %55, %v17
  %v57 = vpop.permute.xlu0 %56
  %58 = vset.pattern.permute.xlu0 0
  %59 = vperm.xlu0 %58, %v18
  %v60 = vpop.permute.xlu0 %59
  %61 = vset.pattern.permute.xlu0 0
  %62 = vperm.xlu0 %61, %v19
  %v63 = vpop.permute.xlu0 %62
  %64 = vset.pattern.permute.xlu0 0
  %65 = vperm.xlu0 %64, %v20
  %v66 = vpop.permute.xlu0 %65
  %67 = vset.pattern.permute.xlu0 0
  %68 = vperm.xlu0 %67, %v21
  %v69 = vpop.permute.xlu0 %68
  %70 = vset.pattern.permute.xlu0 0
  %71 = vperm.xlu0 %70, %v22
  %v72 = vpop.permute.xlu0 %71
  %73 = vset.pattern.permute.xlu0 0
  %74 = vperm.xlu0 %73, %v23
  %v75 = vpop.permute.xlu0 %74
  %76 = vset.pattern.permute.xlu0 0
  %77 = vperm.xlu0 %76, %v24
  %v78 = vpop.permute.xlu0 %77
  %79 = vset.pattern.permute.xlu0 0
  %80 = vperm.xlu0 %79, %v25
  %v81 = vpop.permute.xlu0 %80
  %82 = vset.pattern.permute.xlu0 0
  %83 = vperm.xlu0 %82, %v26
  %v84 = vpop.permute.xlu0 %83
  %85 = vset.pattern.permute.xlu0 0
  %86 = vperm.xlu0 %85, %v27
  %v87 = vpop.permute.xlu0 %86
  %88 = vset.pattern.permute.xlu0 0
  %89 = vperm.xlu0 %88, %v28
  %v90 = vpop.permute.xlu0 %89
  %91 = vset.pattern.permute.xlu0 0
  %92 = vperm.xlu0 %91, %v29
  %v93 = vpop.permute.xlu0 %92
  %94 = vset.pattern.permute.xlu0 0
  %95 = vperm.xlu0 %94, %v30
  %v96 = vpop.permute.xlu0 %95
  %97 = vset.pattern.permute.xlu0 0
  %98 = vperm.xlu0 %97, %v31
  %v99 = vpop.permute.xlu0 %98
  %100 = vset.pattern.permute.xlu0 0
  %101 = vperm.xlu0 %100, %v32
  %v102 = vpop.permute.xlu0 %101
  %103 = vset.pattern.permute.xlu0 0
  %104 = vperm.xlu0 %103, %v33
  %v105 = vpop.permute.xlu0 %104
  %106 = vset.pattern.permute.xlu0 0
  %107 = vperm.xlu0 %106, %v34
  %v108 = vpop.permute.xlu0 %107
  %109 = vset.pattern.permute.xlu0 0
  %110 = vperm.xlu0 %109, %v35
  %v111 = vpop.permute.xlu0 %110
  %112 = vset.pattern.permute.xlu0 0
  %113 = vperm.xlu0 %112, %v36
  %v114 = vpop.permute.xlu0 %113
  %115 = vset.pattern.permute.xlu0 0
  %116 = vperm.xlu0 %115, %v37
  %v117 = vpop.permute.xlu0 %116
  %118 = vset.pattern.permute.xlu0 0
  %119 = vperm.xlu0 %118, %v38
  %v120 = vpop.permute.xlu0 %119
  %121 = vset.pattern.permute.xlu0 0
  %122 = vperm.xlu0 %121, %v39
  %v123 = vpop.permute.xlu0 %122
  %124 = vset.pattern.permute.xlu0 0
  %125 = vperm.xlu0 %124, %v40
  %v126 = vpop.permute.xlu0 %125
  %127 = vset.pattern.permute.xlu0 0
  %128 = vperm.xlu0 %127, %v41
  %v129 = vpop.permute.xlu0 %128
  %130 = vset.pattern.permute.xlu0 0
  %131 = vperm.xlu0 %130, %v42
  %v132 = vpop.permute.xlu0 %131
  %133 = vset.pattern.permute.xlu0 0
  %134 = vperm.xlu0 %133, %v43
  %v135 = vpop.permute.xlu0 %134
  %136 = vset.pattern.permute.xlu0 0
  %137 = vperm.xlu0 %136, %v44
  %v138 = vpop.permute.xlu0 %137
  %139 = vset.pattern.permute.xlu0 0
  %140 = vperm.xlu0 %139, %v45
  %v141 = vpop.permute.xlu0 %140
  %142 = vset.pattern.permute.xlu0 0
  %143 = vperm.xlu0 %142, %v46
  %v144 = vpop.permute.xlu0 %143
  %vm145 = vcmp.eq.s32.totalorder %v51, %v48
  %vm146 = vcmp.eq.s32.totalorder %v54, %v48
  %vm147 = vcmp.eq.s32.totalorder %v57, %v48
  %vm148 = vcmp.eq.s32.totalorder %v60, %v48
  %vm149 = vcmp.eq.s32.totalorder %v63, %v48
  %vm150 = vcmp.eq.s32.totalorder %v66, %v48
  %vm151 = vcmp.eq.s32.totalorder %v69, %v48
  %vm152 = vcmp.eq.s32.totalorder %v72, %v48
  %vm153 = vcmp.eq.s32.totalorder %v75, %v48
  %vm154 = vcmp.eq.s32.totalorder %v78, %v48
  %vm155 = vcmp.eq.s32.totalorder %v81, %v48
  %vm156 = vcmp.eq.s32.totalorder %v84, %v48
  %vm157 = vcmp.eq.s32.totalorder %v87, %v48
  %vm158 = vcmp.eq.s32.totalorder %v90, %v48
  %vm159 = vcmp.eq.s32.totalorder %v93, %v48
  %vm160 = vcmp.eq.s32.totalorder %v96, %v48
  %vm161 = vcmp.eq.s32.totalorder %v99, %v48
  %vm162 = vcmp.eq.s32.totalorder %v102, %v48
  %vm163 = vcmp.eq.s32.totalorder %v105, %v48
  %vm164 = vcmp.eq.s32.totalorder %v108, %v48
  %vm165 = vcmp.eq.s32.totalorder %v111, %v48
  %vm166 = vcmp.eq.s32.totalorder %v114, %v48
  %vm167 = vcmp.eq.s32.totalorder %v117, %v48
  %vm168 = vcmp.eq.s32.totalorder %v120, %v48
  %vm169 = vcmp.eq.s32.totalorder %v123, %v48
  %vm170 = vcmp.eq.s32.totalorder %v126, %v48
  %vm171 = vcmp.eq.s32.totalorder %v129, %v48
  %vm172 = vcmp.eq.s32.totalorder %v132, %v48
  %vm173 = vcmp.eq.s32.totalorder %v135, %v48
  %vm174 = vcmp.eq.s32.totalorder %v138, %v48
  %vm175 = vcmp.eq.s32.totalorder %v141, %v48
  %vm176 = vcmp.eq.s32.totalorder %v144, %v48
  %v177 = vsel %vm145, 1, 0
  %v178 = vsel %vm146, 1, 0
  %v179 = vsel %vm147, 1, 0
  %v180 = vsel %vm148, 1, 0
  %v181 = vsel %vm149, 1, 0
  %v182 = vsel %vm150, 1, 0
  %v183 = vsel %vm151, 1, 0
  %v184 = vsel %vm152, 1, 0
  %v185 = vsel %vm153, 1, 0
  %v186 = vsel %vm154, 1, 0
  %v187 = vsel %vm155, 1, 0
  %v188 = vsel %vm156, 1, 0
  %v189 = vsel %vm157, 1, 0
  %v190 = vsel %vm158, 1, 0
  %v191 = vsel %vm159, 1, 0
  %v192 = vsel %vm160, 1, 0
  %v193 = vsel %vm161, 1, 0
  %v194 = vsel %vm162, 1, 0
  %v195 = vsel %vm163, 1, 0
  %v196 = vsel %vm164, 1, 0
  %v197 = vsel %vm165, 1, 0
  %v198 = vsel %vm166, 1, 0
  %v199 = vsel %vm167, 1, 0
  %v200 = vsel %vm168, 1, 0
  %v201 = vsel %vm169, 1, 0
  %v202 = vsel %vm170, 1, 0
  %v203 = vsel %vm171, 1, 0
  %v204 = vsel %vm172, 1, 0
  %v205 = vsel %vm173, 1, 0
  %v206 = vsel %vm174, 1, 0
  %v207 = vsel %vm175, 1, 0
  %v208 = vsel %vm176, 1, 0
  %v209 = vcvt.s32.f32 %v177
  %v210 = vcvt.s32.f32 %v178
  %v211 = vcvt.s32.f32 %v179
  %v212 = vcvt.s32.f32 %v180
  %v213 = vcvt.s32.f32 %v181
  %v214 = vcvt.s32.f32 %v182
  %v215 = vcvt.s32.f32 %v183
  %v216 = vcvt.s32.f32 %v184
  %v217 = vcvt.s32.f32 %v185
  %v218 = vcvt.s32.f32 %v186
  %v219 = vcvt.s32.f32 %v187
  %v220 = vcvt.s32.f32 %v188
  %v221 = vcvt.s32.f32 %v189
  %v222 = vcvt.s32.f32 %v190
  %v223 = vcvt.s32.f32 %v191
  %v224 = vcvt.s32.f32 %v192
  %v225 = vcvt.s32.f32 %v193
  %v226 = vcvt.s32.f32 %v194
  %v227 = vcvt.s32.f32 %v195
  %v228 = vcvt.s32.f32 %v196
  %v229 = vcvt.s32.f32 %v197
  %v230 = vcvt.s32.f32 %v198
  %v231 = vcvt.s32.f32 %v199
  %v232 = vcvt.s32.f32 %v200
  %v233 = vcvt.s32.f32 %v201
  %v234 = vcvt.s32.f32 %v202
  %v235 = vcvt.s32.f32 %v203
  %v236 = vcvt.s32.f32 %v204
  %v237 = vcvt.s32.f32 %v205
  %v238 = vcvt.s32.f32 %v206
  %v239 = vcvt.s32.f32 %v207
  %v240 = vcvt.s32.f32 %v208
  %v241 = vpack.c.bf16 %v210, %v209
  %v242 = vpack.c.bf16 %v212, %v211
  %v243 = vpack.c.bf16 %v214, %v213
  %v244 = vpack.c.bf16 %v216, %v215
  %v245 = vpack.c.bf16 %v218, %v217
  %v246 = vpack.c.bf16 %v220, %v219
  %v247 = vpack.c.bf16 %v222, %v221
  %v248 = vpack.c.bf16 %v224, %v223
  %v249 = vpack.c.bf16 %v226, %v225
  %v250 = vpack.c.bf16 %v228, %v227
  %v251 = vpack.c.bf16 %v230, %v229
  %v252 = vpack.c.bf16 %v232, %v231
  %v253 = vpack.c.bf16 %v234, %v233
  %v254 = vpack.c.bf16 %v236, %v235
  %v255 = vpack.c.bf16 %v238, %v237
  %v256 = vpack.c.bf16 %v240, %v239
  %v257 = vadd.bf16 %v241, 0
  %v258 = vadd.bf16 %v242, 0
  %v259 = vadd.bf16 %v243, 0
  %v260 = vadd.bf16 %v244, 0
  %v261 = vadd.bf16 %v245, 0
  %v262 = vadd.bf16 %v246, 0
  %v263 = vadd.bf16 %v247, 0
  %v264 = vadd.bf16 %v248, 0
  %v265 = vadd.bf16 %v249, 0
  %v266 = vadd.bf16 %v250, 0
  %v267 = vadd.bf16 %v251, 0
  %v268 = vadd.bf16 %v252, 0
  %v269 = vadd.bf16 %v253, 0
  %v270 = vadd.bf16 %v254, 0
  %v271 = vadd.bf16 %v255, 0
  %v272 = vadd.bf16 %v256, 0
  %273 = vset.pattern.permute.xlu0 1
  %274 = vperm.xlu0 %273, %v15
  %v275 = vpop.permute.xlu0 %274
  %276 = vset.pattern.permute.xlu0 1
  %277 = vperm.xlu0 %276, %v16
  %v278 = vpop.permute.xlu0 %277
  %279 = vset.pattern.permute.xlu0 1
  %280 = vperm.xlu0 %279, %v17
  %v281 = vpop.permute.xlu0 %280
  %282 = vset.pattern.permute.xlu0 1
  %283 = vperm.xlu0 %282, %v18
  %v284 = vpop.permute.xlu0 %283
  %285 = vset.pattern.permute.xlu0 1
  %286 = vperm.xlu0 %285, %v19
  %v287 = vpop.permute.xlu0 %286
  %288 = vset.pattern.permute.xlu0 1
  %289 = vperm.xlu0 %288, %v20
  %v290 = vpop.permute.xlu0 %289
  %291 = vset.pattern.permute.xlu0 1
  %292 = vperm.xlu0 %291, %v21
  %v293 = vpop.permute.xlu0 %292
  %294 = vset.pattern.permute.xlu0 1
  %295 = vperm.xlu0 %294, %v22
  %v296 = vpop.permute.xlu0 %295
  %297 = vset.pattern.permute.xlu0 1
  %298 = vperm.xlu0 %297, %v23
  %v299 = vpop.permute.xlu0 %298
  %300 = vset.pattern.permute.xlu0 1
  %301 = vperm.xlu0 %300, %v24
  %v302 = vpop.permute.xlu0 %301
  %303 = vset.pattern.permute.xlu0 1
  %304 = vperm.xlu0 %303, %v25
  %v305 = vpop.permute.xlu0 %304
  %306 = vset.pattern.permute.xlu0 1
  %307 = vperm.xlu0 %306, %v26
  %v308 = vpop.permute.xlu0 %307
  %309 = vset.pattern.permute.xlu0 1
  %310 = vperm.xlu0 %309, %v27
  %v311 = vpop.permute.xlu0 %310
  %312 = vset.pattern.permute.xlu0 1
  %313 = vperm.xlu0 %312, %v28
  %v314 = vpop.permute.xlu0 %313
  %315 = vset.pattern.permute.xlu0 1
  %316 = vperm.xlu0 %315, %v29
  %v317 = vpop.permute.xlu0 %316
  %318 = vset.pattern.permute.xlu0 1
  %319 = vperm.xlu0 %318, %v30
  %v320 = vpop.permute.xlu0 %319
  %321 = vset.pattern.permute.xlu0 1
  %322 = vperm.xlu0 %321, %v31
  %v323 = vpop.permute.xlu0 %322
  %324 = vset.pattern.permute.xlu0 1
  %325 = vperm.xlu0 %324, %v32
  %v326 = vpop.permute.xlu0 %325
  %327 = vset.pattern.permute.xlu0 1
  %328 = vperm.xlu0 %327, %v33
  %v329 = vpop.permute.xlu0 %328
  %330 = vset.pattern.permute.xlu0 1
  %331 = vperm.xlu0 %330, %v34
  %v332 = vpop.permute.xlu0 %331
  %333 = vset.pattern.permute.xlu0 1
  %334 = vperm.xlu0 %333, %v35
  %v335 = vpop.permute.xlu0 %334
  %336 = vset.pattern.permute.xlu0 1
  %337 = vperm.xlu0 %336, %v36
  %v338 = vpop.permute.xlu0 %337
  %339 = vset.pattern.permute.xlu0 1
  %340 = vperm.xlu0 %339, %v37
  %v341 = vpop.permute.xlu0 %340
  %342 = vset.pattern.permute.xlu0 1
  %343 = vperm.xlu0 %342, %v38
  %v344 = vpop.permute.xlu0 %343
  %345 = vset.pattern.permute.xlu0 1
  %346 = vperm.xlu0 %345, %v39
  %v347 = vpop.permute.xlu0 %346
  %348 = vset.pattern.permute.xlu0 1
  %349 = vperm.xlu0 %348, %v40
  %v350 = vpop.permute.xlu0 %349
  %351 = vset.pattern.permute.xlu0 1
  %352 = vperm.xlu0 %351, %v41
  %v353 = vpop.permute.xlu0 %352
  %354 = vset.pattern.permute.xlu0 1
  %355 = vperm.xlu0 %354, %v42
  %v356 = vpop.permute.xlu0 %355
  %357 = vset.pattern.permute.xlu0 1
  %358 = vperm.xlu0 %357, %v43
  %v359 = vpop.permute.xlu0 %358
  %360 = vset.pattern.permute.xlu0 1
  %361 = vperm.xlu0 %360, %v44
  %v362 = vpop.permute.xlu0 %361
  %363 = vset.pattern.permute.xlu0 1
  %364 = vperm.xlu0 %363, %v45
  %v365 = vpop.permute.xlu0 %364
  %366 = vset.pattern.permute.xlu0 1
  %367 = vperm.xlu0 %366, %v46
  %v368 = vpop.permute.xlu0 %367
  %vm369 = vcmp.eq.s32.totalorder %v275, %v48
  %vm370 = vcmp.eq.s32.totalorder %v278, %v48
  %vm371 = vcmp.eq.s32.totalorder %v281, %v48
  %vm372 = vcmp.eq.s32.totalorder %v284, %v48
  %vm373 = vcmp.eq.s32.totalorder %v287, %v48
  %vm374 = vcmp.eq.s32.totalorder %v290, %v48
  %vm375 = vcmp.eq.s32.totalorder %v293, %v48
  %vm376 = vcmp.eq.s32.totalorder %v296, %v48
  %vm377 = vcmp.eq.s32.totalorder %v299, %v48
  %vm378 = vcmp.eq.s32.totalorder %v302, %v48
  %vm379 = vcmp.eq.s32.totalorder %v305, %v48
  %vm380 = vcmp.eq.s32.totalorder %v308, %v48
  %vm381 = vcmp.eq.s32.totalorder %v311, %v48
  %vm382 = vcmp.eq.s32.totalorder %v314, %v48
  %vm383 = vcmp.eq.s32.totalorder %v317, %v48
  %vm384 = vcmp.eq.s32.totalorder %v320, %v48
  %vm385 = vcmp.eq.s32.totalorder %v323, %v48
  %vm386 = vcmp.eq.s32.totalorder %v326, %v48
  %vm387 = vcmp.eq.s32.totalorder %v329, %v48
  %vm388 = vcmp.eq.s32.totalorder %v332, %v48
  %vm389 = vcmp.eq.s32.totalorder %v335, %v48
  %vm390 = vcmp.eq.s32.totalorder %v338, %v48
  %vm391 = vcmp.eq.s32.totalorder %v341, %v48
  %vm392 = vcmp.eq.s32.totalorder %v344, %v48
  %vm393 = vcmp.eq.s32.totalorder %v347, %v48
  %vm394 = vcmp.eq.s32.totalorder %v350, %v48
  %vm395 = vcmp.eq.s32.totalorder %v353, %v48
  %vm396 = vcmp.eq.s32.totalorder %v356, %v48
  %vm397 = vcmp.eq.s32.totalorder %v359, %v48
  %vm398 = vcmp.eq.s32.totalorder %v362, %v48
  %vm399 = vcmp.eq.s32.totalorder %v365, %v48
  %vm400 = vcmp.eq.s32.totalorder %v368, %v48
  %v401 = vsel %vm369, 1, 0
  %v402 = vsel %vm370, 1, 0
  %v403 = vsel %vm371, 1, 0
  %v404 = vsel %vm372, 1, 0
  %v405 = vsel %vm373, 1, 0
  %v406 = vsel %vm374, 1, 0
  %v407 = vsel %vm375, 1, 0
  %v408 = vsel %vm376, 1, 0
  %v409 = vsel %vm377, 1, 0
  %v410 = vsel %vm378, 1, 0
  %v411 = vsel %vm379, 1, 0
  %v412 = vsel %vm380, 1, 0
  %v413 = vsel %vm381, 1, 0
  %v414 = vsel %vm382, 1, 0
  %v415 = vsel %vm383, 1, 0
  %v416 = vsel %vm384, 1, 0
  %v417 = vsel %vm385, 1, 0
  %v418 = vsel %vm386, 1, 0
  %v419 = vsel %vm387, 1, 0
  %v420 = vsel %vm388, 1, 0
  %v421 = vsel %vm389, 1, 0
  %v422 = vsel %vm390, 1, 0
  %v423 = vsel %vm391, 1, 0
  %v424 = vsel %vm392, 1, 0
  %v425 = vsel %vm393, 1, 0
  %v426 = vsel %vm394, 1, 0
  %v427 = vsel %vm395, 1, 0
  %v428 = vsel %vm396, 1, 0
  %v429 = vsel %vm397, 1, 0
  %v430 = vsel %vm398, 1, 0
  %v431 = vsel %vm399, 1, 0
  %v432 = vsel %vm400, 1, 0
  %v433 = vcvt.s32.f32 %v401
  %v434 = vcvt.s32.f32 %v402
  %v435 = vcvt.s32.f32 %v403
  %v436 = vcvt.s32.f32 %v404
  %v437 = vcvt.s32.f32 %v405
  %v438 = vcvt.s32.f32 %v406
  %v439 = vcvt.s32.f32 %v407
  %v440 = vcvt.s32.f32 %v408
  %v441 = vcvt.s32.f32 %v409
  %v442 = vcvt.s32.f32 %v410
  %v443 = vcvt.s32.f32 %v411
  %v444 = vcvt.s32.f32 %v412
  %v445 = vcvt.s32.f32 %v413
  %v446 = vcvt.s32.f32 %v414
  %v447 = vcvt.s32.f32 %v415
  %v448 = vcvt.s32.f32 %v416
  %v449 = vcvt.s32.f32 %v417
  %v450 = vcvt.s32.f32 %v418
  %v451 = vcvt.s32.f32 %v419
  %v452 = vcvt.s32.f32 %v420
  %v453 = vcvt.s32.f32 %v421
  %v454 = vcvt.s32.f32 %v422
  %v455 = vcvt.s32.f32 %v423
  %v456 = vcvt.s32.f32 %v424
  %v457 = vcvt.s32.f32 %v425
  %v458 = vcvt.s32.f32 %v426
  %v459 = vcvt.s32.f32 %v427
  %v460 = vcvt.s32.f32 %v428
  %v461 = vcvt.s32.f32 %v429
  %v462 = vcvt.s32.f32 %v430
  %v463 = vcvt.s32.f32 %v431
  %v464 = vcvt.s32.f32 %v432
  %v465 = vpack.c.bf16 %v434, %v433
  %v466 = vpack.c.bf16 %v436, %v435
  %v467 = vpack.c.bf16 %v438, %v437
  %v468 = vpack.c.bf16 %v440, %v439
  %v469 = vpack.c.bf16 %v442, %v441
  %v470 = vpack.c.bf16 %v444, %v443
  %v471 = vpack.c.bf16 %v446, %v445
  %v472 = vpack.c.bf16 %v448, %v447
  %v473 = vpack.c.bf16 %v450, %v449
  %v474 = vpack.c.bf16 %v452, %v451
  %v475 = vpack.c.bf16 %v454, %v453
  %v476 = vpack.c.bf16 %v456, %v455
  %v477 = vpack.c.bf16 %v458, %v457
  %v478 = vpack.c.bf16 %v460, %v459
  %v479 = vpack.c.bf16 %v462, %v461
  %v480 = vpack.c.bf16 %v464, %v463
  %v481 = vadd.bf16 %v257, %v465
  %v482 = vadd.bf16 %v258, %v466
  %v483 = vadd.bf16 %v259, %v467
  %v484 = vadd.bf16 %v260, %v468
  %v485 = vadd.bf16 %v261, %v469
  %v486 = vadd.bf16 %v262, %v470
  %v487 = vadd.bf16 %v263, %v471
  %v488 = vadd.bf16 %v264, %v472
  %v489 = vadd.bf16 %v265, %v473
  %v490 = vadd.bf16 %v266, %v474
  %v491 = vadd.bf16 %v267, %v475
  %v492 = vadd.bf16 %v268, %v476
  %v493 = vadd.bf16 %v269, %v477
  %v494 = vadd.bf16 %v270, %v478
  %v495 = vadd.bf16 %v271, %v479
  %v496 = vadd.bf16 %v272, %v480
  %497 = vset.pattern.permute.xlu0 2
  %498 = vperm.xlu0 %497, %v15
  %v499 = vpop.permute.xlu0 %498
  %500 = vset.pattern.permute.xlu0 2
  %501 = vperm.xlu0 %500, %v16
  %v502 = vpop.permute.xlu0 %501
  %503 = vset.pattern.permute.xlu0 2
  %504 = vperm.xlu0 %503, %v17
  %v505 = vpop.permute.xlu0 %504
  %506 = vset.pattern.permute.xlu0 2
  %507 = vperm.xlu0 %506, %v18
  %v508 = vpop.permute.xlu0 %507
  %509 = vset.pattern.permute.xlu0 2
  %510 = vperm.xlu0 %509, %v19
  %v511 = vpop.permute.xlu0 %510
  %512 = vset.pattern.permute.xlu0 2
  %513 = vperm.xlu0 %512, %v20
  %v514 = vpop.permute.xlu0 %513
  %515 = vset.pattern.permute.xlu0 2
  %516 = vperm.xlu0 %515, %v21
  %v517 = vpop.permute.xlu0 %516
  %518 = vset.pattern.permute.xlu0 2
  %519 = vperm.xlu0 %518, %v22
  %v520 = vpop.permute.xlu0 %519
  %521 = vset.pattern.permute.xlu0 2
  %522 = vperm.xlu0 %521, %v23
  %v523 = vpop.permute.xlu0 %522
  %524 = vset.pattern.permute.xlu0 2
  %525 = vperm.xlu0 %524, %v24
  %v526 = vpop.permute.xlu0 %525
  %527 = vset.pattern.permute.xlu0 2
  %528 = vperm.xlu0 %527, %v25
  %v529 = vpop.permute.xlu0 %528
  %530 = vset.pattern.permute.xlu0 2
  %531 = vperm.xlu0 %530, %v26
  %v532 = vpop.permute.xlu0 %531
  %533 = vset.pattern.permute.xlu0 2
  %534 = vperm.xlu0 %533, %v27
  %v535 = vpop.permute.xlu0 %534
  %536 = vset.pattern.permute.xlu0 2
  %537 = vperm.xlu0 %536, %v28
  %v538 = vpop.permute.xlu0 %537
  %539 = vset.pattern.permute.xlu0 2
  %540 = vperm.xlu0 %539, %v29
  %v541 = vpop.permute.xlu0 %540
  %542 = vset.pattern.permute.xlu0 2
  %543 = vperm.xlu0 %542, %v30
  %v544 = vpop.permute.xlu0 %543
  %545 = vset.pattern.permute.xlu0 2
  %546 = vperm.xlu0 %545, %v31
  %v547 = vpop.permute.xlu0 %546
  %548 = vset.pattern.permute.xlu0 2
  %549 = vperm.xlu0 %548, %v32
  %v550 = vpop.permute.xlu0 %549
  %551 = vset.pattern.permute.xlu0 2
  %552 = vperm.xlu0 %551, %v33
  %v553 = vpop.permute.xlu0 %552
  %554 = vset.pattern.permute.xlu0 2
  %555 = vperm.xlu0 %554, %v34
  %v556 = vpop.permute.xlu0 %555
  %557 = vset.pattern.permute.xlu0 2
  %558 = vperm.xlu0 %557, %v35
  %v559 = vpop.permute.xlu0 %558
  %560 = vset.pattern.permute.xlu0 2
  %561 = vperm.xlu0 %560, %v36
  %v562 = vpop.permute.xlu0 %561
  %563 = vset.pattern.permute.xlu0 2
  %564 = vperm.xlu0 %563, %v37
  %v565 = vpop.permute.xlu0 %564
  %566 = vset.pattern.permute.xlu0 2
  %567 = vperm.xlu0 %566, %v38
  %v568 = vpop.permute.xlu0 %567
  %569 = vset.pattern.permute.xlu0 2
  %570 = vperm.xlu0 %569, %v39
  %v571 = vpop.permute.xlu0 %570
  %572 = vset.pattern.permute.xlu0 2
  %573 = vperm.xlu0 %572, %v40
  %v574 = vpop.permute.xlu0 %573
  %575 = vset.pattern.permute.xlu0 2
  %576 = vperm.xlu0 %575, %v41
  %v577 = vpop.permute.xlu0 %576
  %578 = vset.pattern.permute.xlu0 2
  %579 = vperm.xlu0 %578, %v42
  %v580 = vpop.permute.xlu0 %579
  %581 = vset.pattern.permute.xlu0 2
  %582 = vperm.xlu0 %581, %v43
  %v583 = vpop.permute.xlu0 %582
  %584 = vset.pattern.permute.xlu0 2
  %585 = vperm.xlu0 %584, %v44
  %v586 = vpop.permute.xlu0 %585
  %587 = vset.pattern.permute.xlu0 2
  %588 = vperm.xlu0 %587, %v45
  %v589 = vpop.permute.xlu0 %588
  %590 = vset.pattern.permute.xlu0 2
  %591 = vperm.xlu0 %590, %v46
  %v592 = vpop.permute.xlu0 %591
  %vm593 = vcmp.eq.s32.totalorder %v499, %v48
  %vm594 = vcmp.eq.s32.totalorder %v502, %v48
  %vm595 = vcmp.eq.s32.totalorder %v505, %v48
  %vm596 = vcmp.eq.s32.totalorder %v508, %v48
  %vm597 = vcmp.eq.s32.totalorder %v511, %v48
  %vm598 = vcmp.eq.s32.totalorder %v514, %v48
  %vm599 = vcmp.eq.s32.totalorder %v517, %v48
  %vm600 = vcmp.eq.s32.totalorder %v520, %v48
  %vm601 = vcmp.eq.s32.totalorder %v523, %v48
  %vm602 = vcmp.eq.s32.totalorder %v526, %v48
  %vm603 = vcmp.eq.s32.totalorder %v529, %v48
  %vm604 = vcmp.eq.s32.totalorder %v532, %v48
  %vm605 = vcmp.eq.s32.totalorder %v535, %v48
  %vm606 = vcmp.eq.s32.totalorder %v538, %v48
  %vm607 = vcmp.eq.s32.totalorder %v541, %v48
  %vm608 = vcmp.eq.s32.totalorder %v544, %v48
  %vm609 = vcmp.eq.s32.totalorder %v547, %v48
  %vm610 = vcmp.eq.s32.totalorder %v550, %v48
  %vm611 = vcmp.eq.s32.totalorder %v553, %v48
  %vm612 = vcmp.eq.s32.totalorder %v556, %v48
  %vm613 = vcmp.eq.s32.totalorder %v559, %v48
  %vm614 = vcmp.eq.s32.totalorder %v562, %v48
  %vm615 = vcmp.eq.s32.totalorder %v565, %v48
  %vm616 = vcmp.eq.s32.totalorder %v568, %v48
  %vm617 = vcmp.eq.s32.totalorder %v571, %v48
  %vm618 = vcmp.eq.s32.totalorder %v574, %v48
  %vm619 = vcmp.eq.s32.totalorder %v577, %v48
  %vm620 = vcmp.eq.s32.totalorder %v580, %v48
  %vm621 = vcmp.eq.s32.totalorder %v583, %v48
  %vm622 = vcmp.eq.s32.totalorder %v586, %v48
  %vm623 = vcmp.eq.s32.totalorder %v589, %v48
  %vm624 = vcmp.eq.s32.totalorder %v592, %v48
  %v625 = vsel %vm593, 1, 0
  %v626 = vsel %vm594, 1, 0
  %v627 = vsel %vm595, 1, 0
  %v628 = vsel %vm596, 1, 0
  %v629 = vsel %vm597, 1, 0
  %v630 = vsel %vm598, 1, 0
  %v631 = vsel %vm599, 1, 0
  %v632 = vsel %vm600, 1, 0
  %v633 = vsel %vm601, 1, 0
  %v634 = vsel %vm602, 1, 0
  %v635 = vsel %vm603, 1, 0
  %v636 = vsel %vm604, 1, 0
  %v637 = vsel %vm605, 1, 0
  %v638 = vsel %vm606, 1, 0
  %v639 = vsel %vm607, 1, 0
  %v640 = vsel %vm608, 1, 0
  %v641 = vsel %vm609, 1, 0
  %v642 = vsel %vm610, 1, 0
  %v643 = vsel %vm611, 1, 0
  %v644 = vsel %vm612, 1, 0
  %v645 = vsel %vm613, 1, 0
  %v646 = vsel %vm614, 1, 0
  %v647 = vsel %vm615, 1, 0
  %v648 = vsel %vm616, 1, 0
  %v649 = vsel %vm617, 1, 0
  %v650 = vsel %vm618, 1, 0
  %v651 = vsel %vm619, 1, 0
  %v652 = vsel %vm620, 1, 0
  %v653 = vsel %vm621, 1, 0
  %v654 = vsel %vm622, 1, 0
  %v655 = vsel %vm623, 1, 0
  %v656 = vsel %vm624, 1, 0
  %v657 = vcvt.s32.f32 %v625
  %v658 = vcvt.s32.f32 %v626
  %v659 = vcvt.s32.f32 %v627
  %v660 = vcvt.s32.f32 %v628
  %v661 = vcvt.s32.f32 %v629
  %v662 = vcvt.s32.f32 %v630
  %v663 = vcvt.s32.f32 %v631
  %v664 = vcvt.s32.f32 %v632
  %v665 = vcvt.s32.f32 %v633
  %v666 = vcvt.s32.f32 %v634
  %v667 = vcvt.s32.f32 %v635
  %v668 = vcvt.s32.f32 %v636
  %v669 = vcvt.s32.f32 %v637
  %v670 = vcvt.s32.f32 %v638
  %v671 = vcvt.s32.f32 %v639
  %v672 = vcvt.s32.f32 %v640
  %v673 = vcvt.s32.f32 %v641
  %v674 = vcvt.s32.f32 %v642
  %v675 = vcvt.s32.f32 %v643
  %v676 = vcvt.s32.f32 %v644
  %v677 = vcvt.s32.f32 %v645
  %v678 = vcvt.s32.f32 %v646
  %v679 = vcvt.s32.f32 %v647
  %v680 = vcvt.s32.f32 %v648
  %v681 = vcvt.s32.f32 %v649
  %v682 = vcvt.s32.f32 %v650
  %v683 = vcvt.s32.f32 %v651
  %v684 = vcvt.s32.f32 %v652
  %v685 = vcvt.s32.f32 %v653
  %v686 = vcvt.s32.f32 %v654
  %v687 = vcvt.s32.f32 %v655
  %v688 = vcvt.s32.f32 %v656
  %v689 = vpack.c.bf16 %v658, %v657
  %v690 = vpack.c.bf16 %v660, %v659
  %v691 = vpack.c.bf16 %v662, %v661
  %v692 = vpack.c.bf16 %v664, %v663
  %v693 = vpack.c.bf16 %v666, %v665
  %v694 = vpack.c.bf16 %v668, %v667
  %v695 = vpack.c.bf16 %v670, %v669
  %v696 = vpack.c.bf16 %v672, %v671
  %v697 = vpack.c.bf16 %v674, %v673
  %v698 = vpack.c.bf16 %v676, %v675
  %v699 = vpack.c.bf16 %v678, %v677
  %v700 = vpack.c.bf16 %v680, %v679
  %v701 = vpack.c.bf16 %v682, %v681
  %v702 = vpack.c.bf16 %v684, %v683
  %v703 = vpack.c.bf16 %v686, %v685
  %v704 = vpack.c.bf16 %v688, %v687
  %v705 = vadd.bf16 %v481, %v689
  %v706 = vadd.bf16 %v482, %v690
  %v707 = vadd.bf16 %v483, %v691
  %v708 = vadd.bf16 %v484, %v692
  %v709 = vadd.bf16 %v485, %v693
  %v710 = vadd.bf16 %v486, %v694
  %v711 = vadd.bf16 %v487, %v695
  %v712 = vadd.bf16 %v488, %v696
  %v713 = vadd.bf16 %v489, %v697
  %v714 = vadd.bf16 %v490, %v698
  %v715 = vadd.bf16 %v491, %v699
  %v716 = vadd.bf16 %v492, %v700
  %v717 = vadd.bf16 %v493, %v701
  %v718 = vadd.bf16 %v494, %v702
  %v719 = vadd.bf16 %v495, %v703
  %v720 = vadd.bf16 %v496, %v704
  %721 = vset.pattern.permute.xlu0 3
  %722 = vperm.xlu0 %721, %v15
  %v723 = vpop.permute.xlu0 %722
  %724 = vset.pattern.permute.xlu0 3
  %725 = vperm.xlu0 %724, %v16
  %v726 = vpop.permute.xlu0 %725
  %727 = vset.pattern.permute.xlu0 3
  %728 = vperm.xlu0 %727, %v17
  %v729 = vpop.permute.xlu0 %728
  %730 = vset.pattern.permute.xlu0 3
  %731 = vperm.xlu0 %730, %v18
  %v732 = vpop.permute.xlu0 %731
  %733 = vset.pattern.permute.xlu0 3
  %734 = vperm.xlu0 %733, %v19
  %v735 = vpop.permute.xlu0 %734
  %736 = vset.pattern.permute.xlu0 3
  %737 = vperm.xlu0 %736, %v20
  %v738 = vpop.permute.xlu0 %737
  %739 = vset.pattern.permute.xlu0 3
  %740 = vperm.xlu0 %739, %v21
  %v741 = vpop.permute.xlu0 %740
  %742 = vset.pattern.permute.xlu0 3
  %743 = vperm.xlu0 %742, %v22
  %v744 = vpop.permute.xlu0 %743
  %745 = vset.pattern.permute.xlu0 3
  %746 = vperm.xlu0 %745, %v23
  %v747 = vpop.permute.xlu0 %746
  %748 = vset.pattern.permute.xlu0 3
  %749 = vperm.xlu0 %748, %v24
  %v750 = vpop.permute.xlu0 %749
  %751 = vset.pattern.permute.xlu0 3
  %752 = vperm.xlu0 %751, %v25
  %v753 = vpop.permute.xlu0 %752
  %754 = vset.pattern.permute.xlu0 3
  %755 = vperm.xlu0 %754, %v26
  %v756 = vpop.permute.xlu0 %755
  %757 = vset.pattern.permute.xlu0 3
  %758 = vperm.xlu0 %757, %v27
  %v759 = vpop.permute.xlu0 %758
  %760 = vset.pattern.permute.xlu0 3
  %761 = vperm.xlu0 %760, %v28
  %v762 = vpop.permute.xlu0 %761
  %763 = vset.pattern.permute.xlu0 3
  %764 = vperm.xlu0 %763, %v29
  %v765 = vpop.permute.xlu0 %764
  %766 = vset.pattern.permute.xlu0 3
  %767 = vperm.xlu0 %766, %v30
  %v768 = vpop.permute.xlu0 %767
  %769 = vset.pattern.permute.xlu0 3
  %770 = vperm.xlu0 %769, %v31
  %v771 = vpop.permute.xlu0 %770
  %772 = vset.pattern.permute.xlu0 3
  %773 = vperm.xlu0 %772, %v32
  %v774 = vpop.permute.xlu0 %773
  %775 = vset.pattern.permute.xlu0 3
  %776 = vperm.xlu0 %775, %v33
  %v777 = vpop.permute.xlu0 %776
  %778 = vset.pattern.permute.xlu0 3
  %779 = vperm.xlu0 %778, %v34
  %v780 = vpop.permute.xlu0 %779
  %781 = vset.pattern.permute.xlu0 3
  %782 = vperm.xlu0 %781, %v35
  %v783 = vpop.permute.xlu0 %782
  %784 = vset.pattern.permute.xlu0 3
  %785 = vperm.xlu0 %784, %v36
  %v786 = vpop.permute.xlu0 %785
  %787 = vset.pattern.permute.xlu0 3
  %788 = vperm.xlu0 %787, %v37
  %v789 = vpop.permute.xlu0 %788
  %790 = vset.pattern.permute.xlu0 3
  %791 = vperm.xlu0 %790, %v38
  %v792 = vpop.permute.xlu0 %791
  %793 = vset.pattern.permute.xlu0 3
  %794 = vperm.xlu0 %793, %v39
  %v795 = vpop.permute.xlu0 %794
  %796 = vset.pattern.permute.xlu0 3
  %797 = vperm.xlu0 %796, %v40
  %v798 = vpop.permute.xlu0 %797
  %799 = vset.pattern.permute.xlu0 3
  %800 = vperm.xlu0 %799, %v41
  %v801 = vpop.permute.xlu0 %800
  %802 = vset.pattern.permute.xlu0 3
  %803 = vperm.xlu0 %802, %v42
  %v804 = vpop.permute.xlu0 %803
  %805 = vset.pattern.permute.xlu0 3
  %806 = vperm.xlu0 %805, %v43
  %v807 = vpop.permute.xlu0 %806
  %808 = vset.pattern.permute.xlu0 3
  %809 = vperm.xlu0 %808, %v44
  %v810 = vpop.permute.xlu0 %809
  %811 = vset.pattern.permute.xlu0 3
  %812 = vperm.xlu0 %811, %v45
  %v813 = vpop.permute.xlu0 %812
  %814 = vset.pattern.permute.xlu0 3
  %815 = vperm.xlu0 %814, %v46
  %v816 = vpop.permute.xlu0 %815
  %vm817 = vcmp.eq.s32.totalorder %v723, %v48
  %vm818 = vcmp.eq.s32.totalorder %v726, %v48
  %vm819 = vcmp.eq.s32.totalorder %v729, %v48
  %vm820 = vcmp.eq.s32.totalorder %v732, %v48
  %vm821 = vcmp.eq.s32.totalorder %v735, %v48
  %vm822 = vcmp.eq.s32.totalorder %v738, %v48
  %vm823 = vcmp.eq.s32.totalorder %v741, %v48
  %vm824 = vcmp.eq.s32.totalorder %v744, %v48
  %vm825 = vcmp.eq.s32.totalorder %v747, %v48
  %vm826 = vcmp.eq.s32.totalorder %v750, %v48
  %vm827 = vcmp.eq.s32.totalorder %v753, %v48
  %vm828 = vcmp.eq.s32.totalorder %v756, %v48
  %vm829 = vcmp.eq.s32.totalorder %v759, %v48
  %vm830 = vcmp.eq.s32.totalorder %v762, %v48
  %vm831 = vcmp.eq.s32.totalorder %v765, %v48
  %vm832 = vcmp.eq.s32.totalorder %v768, %v48
  %vm833 = vcmp.eq.s32.totalorder %v771, %v48
  %vm834 = vcmp.eq.s32.totalorder %v774, %v48
  %vm835 = vcmp.eq.s32.totalorder %v777, %v48
  %vm836 = vcmp.eq.s32.totalorder %v780, %v48
  %vm837 = vcmp.eq.s32.totalorder %v783, %v48
  %vm838 = vcmp.eq.s32.totalorder %v786, %v48
  %vm839 = vcmp.eq.s32.totalorder %v789, %v48
  %vm840 = vcmp.eq.s32.totalorder %v792, %v48
  %vm841 = vcmp.eq.s32.totalorder %v795, %v48
  %vm842 = vcmp.eq.s32.totalorder %v798, %v48
  %vm843 = vcmp.eq.s32.totalorder %v801, %v48
  %vm844 = vcmp.eq.s32.totalorder %v804, %v48
  %vm845 = vcmp.eq.s32.totalorder %v807, %v48
  %vm846 = vcmp.eq.s32.totalorder %v810, %v48
  %vm847 = vcmp.eq.s32.totalorder %v813, %v48
  %vm848 = vcmp.eq.s32.totalorder %v816, %v48
  %v849 = vsel %vm817, 1, 0
  %v850 = vsel %vm818, 1, 0
  %v851 = vsel %vm819, 1, 0
  %v852 = vsel %vm820, 1, 0
  %v853 = vsel %vm821, 1, 0
  %v854 = vsel %vm822, 1, 0
  %v855 = vsel %vm823, 1, 0
  %v856 = vsel %vm824, 1, 0
  %v857 = vsel %vm825, 1, 0
  %v858 = vsel %vm826, 1, 0
  %v859 = vsel %vm827, 1, 0
  %v860 = vsel %vm828, 1, 0
  %v861 = vsel %vm829, 1, 0
  %v862 = vsel %vm830, 1, 0
  %v863 = vsel %vm831, 1, 0
  %v864 = vsel %vm832, 1, 0
  %v865 = vsel %vm833, 1, 0
  %v866 = vsel %vm834, 1, 0
  %v867 = vsel %vm835, 1, 0
  %v868 = vsel %vm836, 1, 0
  %v869 = vsel %vm837, 1, 0
  %v870 = vsel %vm838, 1, 0
  %v871 = vsel %vm839, 1, 0
  %v872 = vsel %vm840, 1, 0
  %v873 = vsel %vm841, 1, 0
  %v874 = vsel %vm842, 1, 0
  %v875 = vsel %vm843, 1, 0
  %v876 = vsel %vm844, 1, 0
  %v877 = vsel %vm845, 1, 0
  %v878 = vsel %vm846, 1, 0
  %v879 = vsel %vm847, 1, 0
  %v880 = vsel %vm848, 1, 0
  %v881 = vcvt.s32.f32 %v849
  %v882 = vcvt.s32.f32 %v850
  %v883 = vcvt.s32.f32 %v851
  %v884 = vcvt.s32.f32 %v852
  %v885 = vcvt.s32.f32 %v853
  %v886 = vcvt.s32.f32 %v854
  %v887 = vcvt.s32.f32 %v855
  %v888 = vcvt.s32.f32 %v856
  %v889 = vcvt.s32.f32 %v857
  %v890 = vcvt.s32.f32 %v858
  %v891 = vcvt.s32.f32 %v859
  %v892 = vcvt.s32.f32 %v860
  %v893 = vcvt.s32.f32 %v861
  %v894 = vcvt.s32.f32 %v862
  %v895 = vcvt.s32.f32 %v863
  %v896 = vcvt.s32.f32 %v864
  %v897 = vcvt.s32.f32 %v865
  %v898 = vcvt.s32.f32 %v866
  %v899 = vcvt.s32.f32 %v867
  %v900 = vcvt.s32.f32 %v868
  %v901 = vcvt.s32.f32 %v869
  %v902 = vcvt.s32.f32 %v870
  %v903 = vcvt.s32.f32 %v871
  %v904 = vcvt.s32.f32 %v872
  %v905 = vcvt.s32.f32 %v873
  %v906 = vcvt.s32.f32 %v874
  %v907 = vcvt.s32.f32 %v875
  %v908 = vcvt.s32.f32 %v876
  %v909 = vcvt.s32.f32 %v877
  %v910 = vcvt.s32.f32 %v878
  %v911 = vcvt.s32.f32 %v879
  %v912 = vcvt.s32.f32 %v880
  %v913 = vpack.c.bf16 %v882, %v881
  %v914 = vpack.c.bf16 %v884, %v883
  %v915 = vpack.c.bf16 %v886, %v885
  %v916 = vpack.c.bf16 %v888, %v887
  %v917 = vpack.c.bf16 %v890, %v889
  %v918 = vpack.c.bf16 %v892, %v891
  %v919 = vpack.c.bf16 %v894, %v893
  %v920 = vpack.c.bf16 %v896, %v895
  %v921 = vpack.c.bf16 %v898, %v897
  %v922 = vpack.c.bf16 %v900, %v899
  %v923 = vpack.c.bf16 %v902, %v901
  %v924 = vpack.c.bf16 %v904, %v903
  %v925 = vpack.c.bf16 %v906, %v905
  %v926 = vpack.c.bf16 %v908, %v907
  %v927 = vpack.c.bf16 %v910, %v909
  %v928 = vpack.c.bf16 %v912, %v911
  %v929 = vadd.bf16 %v705, %v913
  %v930 = vadd.bf16 %v706, %v914
  %v931 = vadd.bf16 %v707, %v915
  %v932 = vadd.bf16 %v708, %v916
  %v933 = vadd.bf16 %v709, %v917
  %v934 = vadd.bf16 %v710, %v918
  %v935 = vadd.bf16 %v711, %v919
  %v936 = vadd.bf16 %v712, %v920
  %v937 = vadd.bf16 %v713, %v921
  %v938 = vadd.bf16 %v714, %v922
  %v939 = vadd.bf16 %v715, %v923
  %v940 = vadd.bf16 %v716, %v924
  %v941 = vadd.bf16 %v717, %v925
  %v942 = vadd.bf16 %v718, %v926
  %v943 = vadd.bf16 %v719, %v927
  %v944 = vadd.bf16 %v720, %v928
  %945 = vset.pattern.permute.xlu0 4
  %946 = vperm.xlu0 %945, %v15
  %v947 = vpop.permute.xlu0 %946
  %948 = vset.pattern.permute.xlu0 4
  %949 = vperm.xlu0 %948, %v16
  %v950 = vpop.permute.xlu0 %949
  %951 = vset.pattern.permute.xlu0 4
  %952 = vperm.xlu0 %951, %v17
  %v953 = vpop.permute.xlu0 %952
  %954 = vset.pattern.permute.xlu0 4
  %955 = vperm.xlu0 %954, %v18
  %v956 = vpop.permute.xlu0 %955
  %957 = vset.pattern.permute.xlu0 4
  %958 = vperm.xlu0 %957, %v19
  %v959 = vpop.permute.xlu0 %958
  %960 = vset.pattern.permute.xlu0 4
  %961 = vperm.xlu0 %960, %v20
  %v962 = vpop.permute.xlu0 %961
  %963 = vset.pattern.permute.xlu0 4
  %964 = vperm.xlu0 %963, %v21
  %v965 = vpop.permute.xlu0 %964
  %966 = vset.pattern.permute.xlu0 4
  %967 = vperm.xlu0 %966, %v22
  %v968 = vpop.permute.xlu0 %967
  %969 = vset.pattern.permute.xlu0 4
  %970 = vperm.xlu0 %969, %v23
  %v971 = vpop.permute.xlu0 %970
  %972 = vset.pattern.permute.xlu0 4
  %973 = vperm.xlu0 %972, %v24
  %v974 = vpop.permute.xlu0 %973
  %975 = vset.pattern.permute.xlu0 4
  %976 = vperm.xlu0 %975, %v25
  %v977 = vpop.permute.xlu0 %976
  %978 = vset.pattern.permute.xlu0 4
  %979 = vperm.xlu0 %978, %v26
  %v980 = vpop.permute.xlu0 %979
  %981 = vset.pattern.permute.xlu0 4
  %982 = vperm.xlu0 %981, %v27
  %v983 = vpop.permute.xlu0 %982
  %984 = vset.pattern.permute.xlu0 4
  %985 = vperm.xlu0 %984, %v28
  %v986 = vpop.permute.xlu0 %985
  %987 = vset.pattern.permute.xlu0 4
  %988 = vperm.xlu0 %987, %v29
  %v989 = vpop.permute.xlu0 %988
  %990 = vset.pattern.permute.xlu0 4
  %991 = vperm.xlu0 %990, %v30
  %v992 = vpop.permute.xlu0 %991
  %993 = vset.pattern.permute.xlu0 4
  %994 = vperm.xlu0 %993, %v31
  %v995 = vpop.permute.xlu0 %994
  %996 = vset.pattern.permute.xlu0 4
  %997 = vperm.xlu0 %996, %v32
  %v998 = vpop.permute.xlu0 %997
  %999 = vset.pattern.permute.xlu0 4
  %1000 = vperm.xlu0 %999, %v33
  %v1001 = vpop.permute.xlu0 %1000
  %1002 = vset.pattern.permute.xlu0 4
  %1003 = vperm.xlu0 %1002, %v34
  %v1004 = vpop.permute.xlu0 %1003
  %1005 = vset.pattern.permute.xlu0 4
  %1006 = vperm.xlu0 %1005, %v35
  %v1007 = vpop.permute.xlu0 %1006
  %1008 = vset.pattern.permute.xlu0 4
  %1009 = vperm.xlu0 %1008, %v36
  %v1010 = vpop.permute.xlu0 %1009
  %1011 = vset.pattern.permute.xlu0 4
  %1012 = vperm.xlu0 %1011, %v37
  %v1013 = vpop.permute.xlu0 %1012
  %1014 = vset.pattern.permute.xlu0 4
  %1015 = vperm.xlu0 %1014, %v38
  %v1016 = vpop.permute.xlu0 %1015
  %1017 = vset.pattern.permute.xlu0 4
  %1018 = vperm.xlu0 %1017, %v39
  %v1019 = vpop.permute.xlu0 %1018
  %1020 = vset.pattern.permute.xlu0 4
  %1021 = vperm.xlu0 %1020, %v40
  %v1022 = vpop.permute.xlu0 %1021
  %1023 = vset.pattern.permute.xlu0 4
  %1024 = vperm.xlu0 %1023, %v41
  %v1025 = vpop.permute.xlu0 %1024
  %1026 = vset.pattern.permute.xlu0 4
  %1027 = vperm.xlu0 %1026, %v42
  %v1028 = vpop.permute.xlu0 %1027
  %1029 = vset.pattern.permute.xlu0 4
  %1030 = vperm.xlu0 %1029, %v43
  %v1031 = vpop.permute.xlu0 %1030
  %1032 = vset.pattern.permute.xlu0 4
  %1033 = vperm.xlu0 %1032, %v44
  %v1034 = vpop.permute.xlu0 %1033
  %1035 = vset.pattern.permute.xlu0 4
  %1036 = vperm.xlu0 %1035, %v45
  %v1037 = vpop.permute.xlu0 %1036
  %1038 = vset.pattern.permute.xlu0 4
  %1039 = vperm.xlu0 %1038, %v46
  %v1040 = vpop.permute.xlu0 %1039
  %vm1041 = vcmp.eq.s32.totalorder %v947, %v48
  %vm1042 = vcmp.eq.s32.totalorder %v950, %v48
  %vm1043 = vcmp.eq.s32.totalorder %v953, %v48
  %vm1044 = vcmp.eq.s32.totalorder %v956, %v48
  %vm1045 = vcmp.eq.s32.totalorder %v959, %v48
  %vm1046 = vcmp.eq.s32.totalorder %v962, %v48
  %vm1047 = vcmp.eq.s32.totalorder %v965, %v48
  %vm1048 = vcmp.eq.s32.totalorder %v968, %v48
  %vm1049 = vcmp.eq.s32.totalorder %v971, %v48
  %vm1050 = vcmp.eq.s32.totalorder %v974, %v48
  %vm1051 = vcmp.eq.s32.totalorder %v977, %v48
  %vm1052 = vcmp.eq.s32.totalorder %v980, %v48
  %vm1053 = vcmp.eq.s32.totalorder %v983, %v48
  %vm1054 = vcmp.eq.s32.totalorder %v986, %v48
  %vm1055 = vcmp.eq.s32.totalorder %v989, %v48
  %vm1056 = vcmp.eq.s32.totalorder %v992, %v48
  %vm1057 = vcmp.eq.s32.totalorder %v995, %v48
  %vm1058 = vcmp.eq.s32.totalorder %v998, %v48
  %vm1059 = vcmp.eq.s32.totalorder %v1001, %v48
  %vm1060 = vcmp.eq.s32.totalorder %v1004, %v48
  %vm1061 = vcmp.eq.s32.totalorder %v1007, %v48
  %vm1062 = vcmp.eq.s32.totalorder %v1010, %v48
  %vm1063 = vcmp.eq.s32.totalorder %v1013, %v48
  %vm1064 = vcmp.eq.s32.totalorder %v1016, %v48
  %vm1065 = vcmp.eq.s32.totalorder %v1019, %v48
  %vm1066 = vcmp.eq.s32.totalorder %v1022, %v48
  %vm1067 = vcmp.eq.s32.totalorder %v1025, %v48
  %vm1068 = vcmp.eq.s32.totalorder %v1028, %v48
  %vm1069 = vcmp.eq.s32.totalorder %v1031, %v48
  %vm1070 = vcmp.eq.s32.totalorder %v1034, %v48
  %vm1071 = vcmp.eq.s32.totalorder %v1037, %v48
  %vm1072 = vcmp.eq.s32.totalorder %v1040, %v48
  %v1073 = vsel %vm1041, 1, 0
  %v1074 = vsel %vm1042, 1, 0
  %v1075 = vsel %vm1043, 1, 0
  %v1076 = vsel %vm1044, 1, 0
  %v1077 = vsel %vm1045, 1, 0
  %v1078 = vsel %vm1046, 1, 0
  %v1079 = vsel %vm1047, 1, 0
  %v1080 = vsel %vm1048, 1, 0
  %v1081 = vsel %vm1049, 1, 0
  %v1082 = vsel %vm1050, 1, 0
  %v1083 = vsel %vm1051, 1, 0
  %v1084 = vsel %vm1052, 1, 0
  %v1085 = vsel %vm1053, 1, 0
  %v1086 = vsel %vm1054, 1, 0
  %v1087 = vsel %vm1055, 1, 0
  %v1088 = vsel %vm1056, 1, 0
  %v1089 = vsel %vm1057, 1, 0
  %v1090 = vsel %vm1058, 1, 0
  %v1091 = vsel %vm1059, 1, 0
  %v1092 = vsel %vm1060, 1, 0
  %v1093 = vsel %vm1061, 1, 0
  %v1094 = vsel %vm1062, 1, 0
  %v1095 = vsel %vm1063, 1, 0
  %v1096 = vsel %vm1064, 1, 0
  %v1097 = vsel %vm1065, 1, 0
  %v1098 = vsel %vm1066, 1, 0
  %v1099 = vsel %vm1067, 1, 0
  %v1100 = vsel %vm1068, 1, 0
  %v1101 = vsel %vm1069, 1, 0
  %v1102 = vsel %vm1070, 1, 0
  %v1103 = vsel %vm1071, 1, 0
  %v1104 = vsel %vm1072, 1, 0
  %v1105 = vcvt.s32.f32 %v1073
  %v1106 = vcvt.s32.f32 %v1074
  %v1107 = vcvt.s32.f32 %v1075
  %v1108 = vcvt.s32.f32 %v1076
  %v1109 = vcvt.s32.f32 %v1077
  %v1110 = vcvt.s32.f32 %v1078
  %v1111 = vcvt.s32.f32 %v1079
  %v1112 = vcvt.s32.f32 %v1080
  %v1113 = vcvt.s32.f32 %v1081
  %v1114 = vcvt.s32.f32 %v1082
  %v1115 = vcvt.s32.f32 %v1083
  %v1116 = vcvt.s32.f32 %v1084
  %v1117 = vcvt.s32.f32 %v1085
  %v1118 = vcvt.s32.f32 %v1086
  %v1119 = vcvt.s32.f32 %v1087
  %v1120 = vcvt.s32.f32 %v1088
  %v1121 = vcvt.s32.f32 %v1089
  %v1122 = vcvt.s32.f32 %v1090
  %v1123 = vcvt.s32.f32 %v1091
  %v1124 = vcvt.s32.f32 %v1092
  %v1125 = vcvt.s32.f32 %v1093
  %v1126 = vcvt.s32.f32 %v1094
  %v1127 = vcvt.s32.f32 %v1095
  %v1128 = vcvt.s32.f32 %v1096
  %v1129 = vcvt.s32.f32 %v1097
  %v1130 = vcvt.s32.f32 %v1098
  %v1131 = vcvt.s32.f32 %v1099
  %v1132 = vcvt.s32.f32 %v1100
  %v1133 = vcvt.s32.f32 %v1101
  %v1134 = vcvt.s32.f32 %v1102
  %v1135 = vcvt.s32.f32 %v1103
  %v1136 = vcvt.s32.f32 %v1104
  %v1137 = vpack.c.bf16 %v1106, %v1105
  %v1138 = vpack.c.bf16 %v1108, %v1107
  %v1139 = vpack.c.bf16 %v1110, %v1109
  %v1140 = vpack.c.bf16 %v1112, %v1111
  %v1141 = vpack.c.bf16 %v1114, %v1113
  %v1142 = vpack.c.bf16 %v1116, %v1115
  %v1143 = vpack.c.bf16 %v1118, %v1117
  %v1144 = vpack.c.bf16 %v1120, %v1119
  %v1145 = vpack.c.bf16 %v1122, %v1121
  %v1146 = vpack.c.bf16 %v1124, %v1123
  %v1147 = vpack.c.bf16 %v1126, %v1125
  %v1148 = vpack.c.bf16 %v1128, %v1127
  %v1149 = vpack.c.bf16 %v1130, %v1129
  %v1150 = vpack.c.bf16 %v1132, %v1131
  %v1151 = vpack.c.bf16 %v1134, %v1133
  %v1152 = vpack.c.bf16 %v1136, %v1135
  %v1153 = vadd.bf16 %v929, %v1137
  %v1154 = vadd.bf16 %v930, %v1138
  %v1155 = vadd.bf16 %v931, %v1139
  %v1156 = vadd.bf16 %v932, %v1140
  %v1157 = vadd.bf16 %v933, %v1141
  %v1158 = vadd.bf16 %v934, %v1142
  %v1159 = vadd.bf16 %v935, %v1143
  %v1160 = vadd.bf16 %v936, %v1144
  %v1161 = vadd.bf16 %v937, %v1145
  %v1162 = vadd.bf16 %v938, %v1146
  %v1163 = vadd.bf16 %v939, %v1147
  %v1164 = vadd.bf16 %v940, %v1148
  %v1165 = vadd.bf16 %v941, %v1149
  %v1166 = vadd.bf16 %v942, %v1150
  %v1167 = vadd.bf16 %v943, %v1151
  %v1168 = vadd.bf16 %v944, %v1152
  %1169 = vset.pattern.permute.xlu0 5
  %1170 = vperm.xlu0 %1169, %v15
  %v1171 = vpop.permute.xlu0 %1170
  %1172 = vset.pattern.permute.xlu0 5
  %1173 = vperm.xlu0 %1172, %v16
  %v1174 = vpop.permute.xlu0 %1173
  %1175 = vset.pattern.permute.xlu0 5
  %1176 = vperm.xlu0 %1175, %v17
  %v1177 = vpop.permute.xlu0 %1176
  %1178 = vset.pattern.permute.xlu0 5
  %1179 = vperm.xlu0 %1178, %v18
  %v1180 = vpop.permute.xlu0 %1179
  %1181 = vset.pattern.permute.xlu0 5
  %1182 = vperm.xlu0 %1181, %v19
  %v1183 = vpop.permute.xlu0 %1182
  %1184 = vset.pattern.permute.xlu0 5
  %1185 = vperm.xlu0 %1184, %v20
  %v1186 = vpop.permute.xlu0 %1185
  %1187 = vset.pattern.permute.xlu0 5
  %1188 = vperm.xlu0 %1187, %v21
  %v1189 = vpop.permute.xlu0 %1188
  %1190 = vset.pattern.permute.xlu0 5
  %1191 = vperm.xlu0 %1190, %v22
  %v1192 = vpop.permute.xlu0 %1191
  %1193 = vset.pattern.permute.xlu0 5
  %1194 = vperm.xlu0 %1193, %v23
  %v1195 = vpop.permute.xlu0 %1194
  %1196 = vset.pattern.permute.xlu0 5
  %1197 = vperm.xlu0 %1196, %v24
  %v1198 = vpop.permute.xlu0 %1197
  %1199 = vset.pattern.permute.xlu0 5
  %1200 = vperm.xlu0 %1199, %v25
  %v1201 = vpop.permute.xlu0 %1200
  %1202 = vset.pattern.permute.xlu0 5
  %1203 = vperm.xlu0 %1202, %v26
  %v1204 = vpop.permute.xlu0 %1203
  %1205 = vset.pattern.permute.xlu0 5
  %1206 = vperm.xlu0 %1205, %v27
  %v1207 = vpop.permute.xlu0 %1206
  %1208 = vset.pattern.permute.xlu0 5
  %1209 = vperm.xlu0 %1208, %v28
  %v1210 = vpop.permute.xlu0 %1209
  %1211 = vset.pattern.permute.xlu0 5
  %1212 = vperm.xlu0 %1211, %v29
  %v1213 = vpop.permute.xlu0 %1212
  %1214 = vset.pattern.permute.xlu0 5
  %1215 = vperm.xlu0 %1214, %v30
  %v1216 = vpop.permute.xlu0 %1215
  %1217 = vset.pattern.permute.xlu0 5
  %1218 = vperm.xlu0 %1217, %v31
  %v1219 = vpop.permute.xlu0 %1218
  %1220 = vset.pattern.permute.xlu0 5
  %1221 = vperm.xlu0 %1220, %v32
  %v1222 = vpop.permute.xlu0 %1221
  %1223 = vset.pattern.permute.xlu0 5
  %1224 = vperm.xlu0 %1223, %v33
  %v1225 = vpop.permute.xlu0 %1224
  %1226 = vset.pattern.permute.xlu0 5
  %1227 = vperm.xlu0 %1226, %v34
  %v1228 = vpop.permute.xlu0 %1227
  %1229 = vset.pattern.permute.xlu0 5
  %1230 = vperm.xlu0 %1229, %v35
  %v1231 = vpop.permute.xlu0 %1230
  %1232 = vset.pattern.permute.xlu0 5
  %1233 = vperm.xlu0 %1232, %v36
  %v1234 = vpop.permute.xlu0 %1233
  %1235 = vset.pattern.permute.xlu0 5
  %1236 = vperm.xlu0 %1235, %v37
  %v1237 = vpop.permute.xlu0 %1236
  %1238 = vset.pattern.permute.xlu0 5
  %1239 = vperm.xlu0 %1238, %v38
  %v1240 = vpop.permute.xlu0 %1239
  %1241 = vset.pattern.permute.xlu0 5
  %1242 = vperm.xlu0 %1241, %v39
  %v1243 = vpop.permute.xlu0 %1242
  %1244 = vset.pattern.permute.xlu0 5
  %1245 = vperm.xlu0 %1244, %v40
  %v1246 = vpop.permute.xlu0 %1245
  %1247 = vset.pattern.permute.xlu0 5
  %1248 = vperm.xlu0 %1247, %v41
  %v1249 = vpop.permute.xlu0 %1248
  %1250 = vset.pattern.permute.xlu0 5
  %1251 = vperm.xlu0 %1250, %v42
  %v1252 = vpop.permute.xlu0 %1251
  %1253 = vset.pattern.permute.xlu0 5
  %1254 = vperm.xlu0 %1253, %v43
  %v1255 = vpop.permute.xlu0 %1254
  %1256 = vset.pattern.permute.xlu0 5
  %1257 = vperm.xlu0 %1256, %v44
  %v1258 = vpop.permute.xlu0 %1257
  %1259 = vset.pattern.permute.xlu0 5
  %1260 = vperm.xlu0 %1259, %v45
  %v1261 = vpop.permute.xlu0 %1260
  %1262 = vset.pattern.permute.xlu0 5
  %1263 = vperm.xlu0 %1262, %v46
  %v1264 = vpop.permute.xlu0 %1263
  %vm1265 = vcmp.eq.s32.totalorder %v1171, %v48
  %vm1266 = vcmp.eq.s32.totalorder %v1174, %v48
  %vm1267 = vcmp.eq.s32.totalorder %v1177, %v48
  %vm1268 = vcmp.eq.s32.totalorder %v1180, %v48
  %vm1269 = vcmp.eq.s32.totalorder %v1183, %v48
  %vm1270 = vcmp.eq.s32.totalorder %v1186, %v48
  %vm1271 = vcmp.eq.s32.totalorder %v1189, %v48
  %vm1272 = vcmp.eq.s32.totalorder %v1192, %v48
  %vm1273 = vcmp.eq.s32.totalorder %v1195, %v48
  %vm1274 = vcmp.eq.s32.totalorder %v1198, %v48
  %vm1275 = vcmp.eq.s32.totalorder %v1201, %v48
  %vm1276 = vcmp.eq.s32.totalorder %v1204, %v48
  %vm1277 = vcmp.eq.s32.totalorder %v1207, %v48
  %vm1278 = vcmp.eq.s32.totalorder %v1210, %v48
  %vm1279 = vcmp.eq.s32.totalorder %v1213, %v48
  %vm1280 = vcmp.eq.s32.totalorder %v1216, %v48
  %vm1281 = vcmp.eq.s32.totalorder %v1219, %v48
  %vm1282 = vcmp.eq.s32.totalorder %v1222, %v48
  %vm1283 = vcmp.eq.s32.totalorder %v1225, %v48
  %vm1284 = vcmp.eq.s32.totalorder %v1228, %v48
  %vm1285 = vcmp.eq.s32.totalorder %v1231, %v48
  %vm1286 = vcmp.eq.s32.totalorder %v1234, %v48
  %vm1287 = vcmp.eq.s32.totalorder %v1237, %v48
  %vm1288 = vcmp.eq.s32.totalorder %v1240, %v48
  %vm1289 = vcmp.eq.s32.totalorder %v1243, %v48
  %vm1290 = vcmp.eq.s32.totalorder %v1246, %v48
  %vm1291 = vcmp.eq.s32.totalorder %v1249, %v48
  %vm1292 = vcmp.eq.s32.totalorder %v1252, %v48
  %vm1293 = vcmp.eq.s32.totalorder %v1255, %v48
  %vm1294 = vcmp.eq.s32.totalorder %v1258, %v48
  %vm1295 = vcmp.eq.s32.totalorder %v1261, %v48
  %vm1296 = vcmp.eq.s32.totalorder %v1264, %v48
  %v1297 = vsel %vm1265, 1, 0
  %v1298 = vsel %vm1266, 1, 0
  %v1299 = vsel %vm1267, 1, 0
  %v1300 = vsel %vm1268, 1, 0
  %v1301 = vsel %vm1269, 1, 0
  %v1302 = vsel %vm1270, 1, 0
  %v1303 = vsel %vm1271, 1, 0
  %v1304 = vsel %vm1272, 1, 0
  %v1305 = vsel %vm1273, 1, 0
  %v1306 = vsel %vm1274, 1, 0
  %v1307 = vsel %vm1275, 1, 0
  %v1308 = vsel %vm1276, 1, 0
  %v1309 = vsel %vm1277, 1, 0
  %v1310 = vsel %vm1278, 1, 0
  %v1311 = vsel %vm1279, 1, 0
  %v1312 = vsel %vm1280, 1, 0
  %v1313 = vsel %vm1281, 1, 0
  %v1314 = vsel %vm1282, 1, 0
  %v1315 = vsel %vm1283, 1, 0
  %v1316 = vsel %vm1284, 1, 0
  %v1317 = vsel %vm1285, 1, 0
  %v1318 = vsel %vm1286, 1, 0
  %v1319 = vsel %vm1287, 1, 0
  %v1320 = vsel %vm1288, 1, 0
  %v1321 = vsel %vm1289, 1, 0
  %v1322 = vsel %vm1290, 1, 0
  %v1323 = vsel %vm1291, 1, 0
  %v1324 = vsel %vm1292, 1, 0
  %v1325 = vsel %vm1293, 1, 0
  %v1326 = vsel %vm1294, 1, 0
  %v1327 = vsel %vm1295, 1, 0
  %v1328 = vsel %vm1296, 1, 0
  %v1329 = vcvt.s32.f32 %v1297
  %v1330 = vcvt.s32.f32 %v1298
  %v1331 = vcvt.s32.f32 %v1299
  %v1332 = vcvt.s32.f32 %v1300
  %v1333 = vcvt.s32.f32 %v1301
  %v1334 = vcvt.s32.f32 %v1302
  %v1335 = vcvt.s32.f32 %v1303
  %v1336 = vcvt.s32.f32 %v1304
  %v1337 = vcvt.s32.f32 %v1305
  %v1338 = vcvt.s32.f32 %v1306
  %v1339 = vcvt.s32.f32 %v1307
  %v1340 = vcvt.s32.f32 %v1308
  %v1341 = vcvt.s32.f32 %v1309
  %v1342 = vcvt.s32.f32 %v1310
  %v1343 = vcvt.s32.f32 %v1311
  %v1344 = vcvt.s32.f32 %v1312
  %v1345 = vcvt.s32.f32 %v1313
  %v1346 = vcvt.s32.f32 %v1314
  %v1347 = vcvt.s32.f32 %v1315
  %v1348 = vcvt.s32.f32 %v1316
  %v1349 = vcvt.s32.f32 %v1317
  %v1350 = vcvt.s32.f32 %v1318
  %v1351 = vcvt.s32.f32 %v1319
  %v1352 = vcvt.s32.f32 %v1320
  %v1353 = vcvt.s32.f32 %v1321
  %v1354 = vcvt.s32.f32 %v1322
  %v1355 = vcvt.s32.f32 %v1323
  %v1356 = vcvt.s32.f32 %v1324
  %v1357 = vcvt.s32.f32 %v1325
  %v1358 = vcvt.s32.f32 %v1326
  %v1359 = vcvt.s32.f32 %v1327
  %v1360 = vcvt.s32.f32 %v1328
  %v1361 = vpack.c.bf16 %v1330, %v1329
  %v1362 = vpack.c.bf16 %v1332, %v1331
  %v1363 = vpack.c.bf16 %v1334, %v1333
  %v1364 = vpack.c.bf16 %v1336, %v1335
  %v1365 = vpack.c.bf16 %v1338, %v1337
  %v1366 = vpack.c.bf16 %v1340, %v1339
  %v1367 = vpack.c.bf16 %v1342, %v1341
  %v1368 = vpack.c.bf16 %v1344, %v1343
  %v1369 = vpack.c.bf16 %v1346, %v1345
  %v1370 = vpack.c.bf16 %v1348, %v1347
  %v1371 = vpack.c.bf16 %v1350, %v1349
  %v1372 = vpack.c.bf16 %v1352, %v1351
  %v1373 = vpack.c.bf16 %v1354, %v1353
  %v1374 = vpack.c.bf16 %v1356, %v1355
  %v1375 = vpack.c.bf16 %v1358, %v1357
  %v1376 = vpack.c.bf16 %v1360, %v1359
  %v1377 = vadd.bf16 %v1153, %v1361
  %v1378 = vadd.bf16 %v1154, %v1362
  %v1379 = vadd.bf16 %v1155, %v1363
  %v1380 = vadd.bf16 %v1156, %v1364
  %v1381 = vadd.bf16 %v1157, %v1365
  %v1382 = vadd.bf16 %v1158, %v1366
  %v1383 = vadd.bf16 %v1159, %v1367
  %v1384 = vadd.bf16 %v1160, %v1368
  %v1385 = vadd.bf16 %v1161, %v1369
  %v1386 = vadd.bf16 %v1162, %v1370
  %v1387 = vadd.bf16 %v1163, %v1371
  %v1388 = vadd.bf16 %v1164, %v1372
  %v1389 = vadd.bf16 %v1165, %v1373
  %v1390 = vadd.bf16 %v1166, %v1374
  %v1391 = vadd.bf16 %v1167, %v1375
  %v1392 = vadd.bf16 %v1168, %v1376
  %1393 = vset.pattern.permute.xlu0 6
  %1394 = vperm.xlu0 %1393, %v15
  %v1395 = vpop.permute.xlu0 %1394
  %1396 = vset.pattern.permute.xlu0 6
  %1397 = vperm.xlu0 %1396, %v16
  %v1398 = vpop.permute.xlu0 %1397
  %1399 = vset.pattern.permute.xlu0 6
  %1400 = vperm.xlu0 %1399, %v17
  %v1401 = vpop.permute.xlu0 %1400
  %1402 = vset.pattern.permute.xlu0 6
  %1403 = vperm.xlu0 %1402, %v18
  %v1404 = vpop.permute.xlu0 %1403
  %1405 = vset.pattern.permute.xlu0 6
  %1406 = vperm.xlu0 %1405, %v19
  %v1407 = vpop.permute.xlu0 %1406
  %1408 = vset.pattern.permute.xlu0 6
  %1409 = vperm.xlu0 %1408, %v20
  %v1410 = vpop.permute.xlu0 %1409
  %1411 = vset.pattern.permute.xlu0 6
  %1412 = vperm.xlu0 %1411, %v21
  %v1413 = vpop.permute.xlu0 %1412
  %1414 = vset.pattern.permute.xlu0 6
  %1415 = vperm.xlu0 %1414, %v22
  %v1416 = vpop.permute.xlu0 %1415
  %1417 = vset.pattern.permute.xlu0 6
  %1418 = vperm.xlu0 %1417, %v23
  %v1419 = vpop.permute.xlu0 %1418
  %1420 = vset.pattern.permute.xlu0 6
  %1421 = vperm.xlu0 %1420, %v24
  %v1422 = vpop.permute.xlu0 %1421
  %1423 = vset.pattern.permute.xlu0 6
  %1424 = vperm.xlu0 %1423, %v25
  %v1425 = vpop.permute.xlu0 %1424
  %1426 = vset.pattern.permute.xlu0 6
  %1427 = vperm.xlu0 %1426, %v26
  %v1428 = vpop.permute.xlu0 %1427
  %1429 = vset.pattern.permute.xlu0 6
  %1430 = vperm.xlu0 %1429, %v27
  %v1431 = vpop.permute.xlu0 %1430
  %1432 = vset.pattern.permute.xlu0 6
  %1433 = vperm.xlu0 %1432, %v28
  %v1434 = vpop.permute.xlu0 %1433
  %1435 = vset.pattern.permute.xlu0 6
  %1436 = vperm.xlu0 %1435, %v29
  %v1437 = vpop.permute.xlu0 %1436
  %1438 = vset.pattern.permute.xlu0 6
  %1439 = vperm.xlu0 %1438, %v30
  %v1440 = vpop.permute.xlu0 %1439
  %1441 = vset.pattern.permute.xlu0 6
  %1442 = vperm.xlu0 %1441, %v31
  %v1443 = vpop.permute.xlu0 %1442
  %1444 = vset.pattern.permute.xlu0 6
  %1445 = vperm.xlu0 %1444, %v32
  %v1446 = vpop.permute.xlu0 %1445
  %1447 = vset.pattern.permute.xlu0 6
  %1448 = vperm.xlu0 %1447, %v33
  %v1449 = vpop.permute.xlu0 %1448
  %1450 = vset.pattern.permute.xlu0 6
  %1451 = vperm.xlu0 %1450, %v34
  %v1452 = vpop.permute.xlu0 %1451
  %1453 = vset.pattern.permute.xlu0 6
  %1454 = vperm.xlu0 %1453, %v35
  %v1455 = vpop.permute.xlu0 %1454
  %1456 = vset.pattern.permute.xlu0 6
  %1457 = vperm.xlu0 %1456, %v36
  %v1458 = vpop.permute.xlu0 %1457
  %1459 = vset.pattern.permute.xlu0 6
  %1460 = vperm.xlu0 %1459, %v37
  %v1461 = vpop.permute.xlu0 %1460
  %1462 = vset.pattern.permute.xlu0 6
  %1463 = vperm.xlu0 %1462, %v38
  %v1464 = vpop.permute.xlu0 %1463
  %1465 = vset.pattern.permute.xlu0 6
  %1466 = vperm.xlu0 %1465, %v39
  %v1467 = vpop.permute.xlu0 %1466
  %1468 = vset.pattern.permute.xlu0 6
  %1469 = vperm.xlu0 %1468, %v40
  %v1470 = vpop.permute.xlu0 %1469
  %1471 = vset.pattern.permute.xlu0 6
  %1472 = vperm.xlu0 %1471, %v41
  %v1473 = vpop.permute.xlu0 %1472
  %1474 = vset.pattern.permute.xlu0 6
  %1475 = vperm.xlu0 %1474, %v42
  %v1476 = vpop.permute.xlu0 %1475
  %1477 = vset.pattern.permute.xlu0 6
  %1478 = vperm.xlu0 %1477, %v43
  %v1479 = vpop.permute.xlu0 %1478
  %1480 = vset.pattern.permute.xlu0 6
  %1481 = vperm.xlu0 %1480, %v44
  %v1482 = vpop.permute.xlu0 %1481
  %1483 = vset.pattern.permute.xlu0 6
  %1484 = vperm.xlu0 %1483, %v45
  %v1485 = vpop.permute.xlu0 %1484
  %1486 = vset.pattern.permute.xlu0 6
  %1487 = vperm.xlu0 %1486, %v46
  %v1488 = vpop.permute.xlu0 %1487
  %vm1489 = vcmp.eq.s32.totalorder %v1395, %v48
  %vm1490 = vcmp.eq.s32.totalorder %v1398, %v48
  %vm1491 = vcmp.eq.s32.totalorder %v1401, %v48
  %vm1492 = vcmp.eq.s32.totalorder %v1404, %v48
  %vm1493 = vcmp.eq.s32.totalorder %v1407, %v48
  %vm1494 = vcmp.eq.s32.totalorder %v1410, %v48
  %vm1495 = vcmp.eq.s32.totalorder %v1413, %v48
  %vm1496 = vcmp.eq.s32.totalorder %v1416, %v48
  %vm1497 = vcmp.eq.s32.totalorder %v1419, %v48
  %vm1498 = vcmp.eq.s32.totalorder %v1422, %v48
  %vm1499 = vcmp.eq.s32.totalorder %v1425, %v48
  %vm1500 = vcmp.eq.s32.totalorder %v1428, %v48
  %vm1501 = vcmp.eq.s32.totalorder %v1431, %v48
  %vm1502 = vcmp.eq.s32.totalorder %v1434, %v48
  %vm1503 = vcmp.eq.s32.totalorder %v1437, %v48
  %vm1504 = vcmp.eq.s32.totalorder %v1440, %v48
  %vm1505 = vcmp.eq.s32.totalorder %v1443, %v48
  %vm1506 = vcmp.eq.s32.totalorder %v1446, %v48
  %vm1507 = vcmp.eq.s32.totalorder %v1449, %v48
  %vm1508 = vcmp.eq.s32.totalorder %v1452, %v48
  %vm1509 = vcmp.eq.s32.totalorder %v1455, %v48
  %vm1510 = vcmp.eq.s32.totalorder %v1458, %v48
  %vm1511 = vcmp.eq.s32.totalorder %v1461, %v48
  %vm1512 = vcmp.eq.s32.totalorder %v1464, %v48
  %vm1513 = vcmp.eq.s32.totalorder %v1467, %v48
  %vm1514 = vcmp.eq.s32.totalorder %v1470, %v48
  %vm1515 = vcmp.eq.s32.totalorder %v1473, %v48
  %vm1516 = vcmp.eq.s32.totalorder %v1476, %v48
  %vm1517 = vcmp.eq.s32.totalorder %v1479, %v48
  %vm1518 = vcmp.eq.s32.totalorder %v1482, %v48
  %vm1519 = vcmp.eq.s32.totalorder %v1485, %v48
  %vm1520 = vcmp.eq.s32.totalorder %v1488, %v48
  %v1521 = vsel %vm1489, 1, 0
  %v1522 = vsel %vm1490, 1, 0
  %v1523 = vsel %vm1491, 1, 0
  %v1524 = vsel %vm1492, 1, 0
  %v1525 = vsel %vm1493, 1, 0
  %v1526 = vsel %vm1494, 1, 0
  %v1527 = vsel %vm1495, 1, 0
  %v1528 = vsel %vm1496, 1, 0
  %v1529 = vsel %vm1497, 1, 0
  %v1530 = vsel %vm1498, 1, 0
  %v1531 = vsel %vm1499, 1, 0
  %v1532 = vsel %vm1500, 1, 0
  %v1533 = vsel %vm1501, 1, 0
  %v1534 = vsel %vm1502, 1, 0
  %v1535 = vsel %vm1503, 1, 0
  %v1536 = vsel %vm1504, 1, 0
  %v1537 = vsel %vm1505, 1, 0
  %v1538 = vsel %vm1506, 1, 0
  %v1539 = vsel %vm1507, 1, 0
  %v1540 = vsel %vm1508, 1, 0
  %v1541 = vsel %vm1509, 1, 0
  %v1542 = vsel %vm1510, 1, 0
  %v1543 = vsel %vm1511, 1, 0
  %v1544 = vsel %vm1512, 1, 0
  %v1545 = vsel %vm1513, 1, 0
  %v1546 = vsel %vm1514, 1, 0
  %v1547 = vsel %vm1515, 1, 0
  %v1548 = vsel %vm1516, 1, 0
  %v1549 = vsel %vm1517, 1, 0
  %v1550 = vsel %vm1518, 1, 0
  %v1551 = vsel %vm1519, 1, 0
  %v1552 = vsel %vm1520, 1, 0
  %v1553 = vcvt.s32.f32 %v1521
  %v1554 = vcvt.s32.f32 %v1522
  %v1555 = vcvt.s32.f32 %v1523
  %v1556 = vcvt.s32.f32 %v1524
  %v1557 = vcvt.s32.f32 %v1525
  %v1558 = vcvt.s32.f32 %v1526
  %v1559 = vcvt.s32.f32 %v1527
  %v1560 = vcvt.s32.f32 %v1528
  %v1561 = vcvt.s32.f32 %v1529
  %v1562 = vcvt.s32.f32 %v1530
  %v1563 = vcvt.s32.f32 %v1531
  %v1564 = vcvt.s32.f32 %v1532
  %v1565 = vcvt.s32.f32 %v1533
  %v1566 = vcvt.s32.f32 %v1534
  %v1567 = vcvt.s32.f32 %v1535
  %v1568 = vcvt.s32.f32 %v1536
  %v1569 = vcvt.s32.f32 %v1537
  %v1570 = vcvt.s32.f32 %v1538
  %v1571 = vcvt.s32.f32 %v1539
  %v1572 = vcvt.s32.f32 %v1540
  %v1573 = vcvt.s32.f32 %v1541
  %v1574 = vcvt.s32.f32 %v1542
  %v1575 = vcvt.s32.f32 %v1543
  %v1576 = vcvt.s32.f32 %v1544
  %v1577 = vcvt.s32.f32 %v1545
  %v1578 = vcvt.s32.f32 %v1546
  %v1579 = vcvt.s32.f32 %v1547
  %v1580 = vcvt.s32.f32 %v1548
  %v1581 = vcvt.s32.f32 %v1549
  %v1582 = vcvt.s32.f32 %v1550
  %v1583 = vcvt.s32.f32 %v1551
  %v1584 = vcvt.s32.f32 %v1552
  %v1585 = vpack.c.bf16 %v1554, %v1553
  %v1586 = vpack.c.bf16 %v1556, %v1555
  %v1587 = vpack.c.bf16 %v1558, %v1557
  %v1588 = vpack.c.bf16 %v1560, %v1559
  %v1589 = vpack.c.bf16 %v1562, %v1561
  %v1590 = vpack.c.bf16 %v1564, %v1563
  %v1591 = vpack.c.bf16 %v1566, %v1565
  %v1592 = vpack.c.bf16 %v1568, %v1567
  %v1593 = vpack.c.bf16 %v1570, %v1569
  %v1594 = vpack.c.bf16 %v1572, %v1571
  %v1595 = vpack.c.bf16 %v1574, %v1573
  %v1596 = vpack.c.bf16 %v1576, %v1575
  %v1597 = vpack.c.bf16 %v1578, %v1577
  %v1598 = vpack.c.bf16 %v1580, %v1579
  %v1599 = vpack.c.bf16 %v1582, %v1581
  %v1600 = vpack.c.bf16 %v1584, %v1583
  %v1601 = vadd.bf16 %v1377, %v1585
  %v1602 = vadd.bf16 %v1378, %v1586
  %v1603 = vadd.bf16 %v1379, %v1587
  %v1604 = vadd.bf16 %v1380, %v1588
  %v1605 = vadd.bf16 %v1381, %v1589
  %v1606 = vadd.bf16 %v1382, %v1590
  %v1607 = vadd.bf16 %v1383, %v1591
  %v1608 = vadd.bf16 %v1384, %v1592
  %v1609 = vadd.bf16 %v1385, %v1593
  %v1610 = vadd.bf16 %v1386, %v1594
  %v1611 = vadd.bf16 %v1387, %v1595
  %v1612 = vadd.bf16 %v1388, %v1596
  %v1613 = vadd.bf16 %v1389, %v1597
  %v1614 = vadd.bf16 %v1390, %v1598
  %v1615 = vadd.bf16 %v1391, %v1599
  %v1616 = vadd.bf16 %v1392, %v1600
  %1617 = vset.pattern.permute.xlu0 7
  %1618 = vperm.xlu0 %1617, %v15
  %v1619 = vpop.permute.xlu0 %1618
  %1620 = vset.pattern.permute.xlu0 7
  %1621 = vperm.xlu0 %1620, %v16
  %v1622 = vpop.permute.xlu0 %1621
  %1623 = vset.pattern.permute.xlu0 7
  %1624 = vperm.xlu0 %1623, %v17
  %v1625 = vpop.permute.xlu0 %1624
  %1626 = vset.pattern.permute.xlu0 7
  %1627 = vperm.xlu0 %1626, %v18
  %v1628 = vpop.permute.xlu0 %1627
  %1629 = vset.pattern.permute.xlu0 7
  %1630 = vperm.xlu0 %1629, %v19
  %v1631 = vpop.permute.xlu0 %1630
  %1632 = vset.pattern.permute.xlu0 7
  %1633 = vperm.xlu0 %1632, %v20
  %v1634 = vpop.permute.xlu0 %1633
  %1635 = vset.pattern.permute.xlu0 7
  %1636 = vperm.xlu0 %1635, %v21
  %v1637 = vpop.permute.xlu0 %1636
  %1638 = vset.pattern.permute.xlu0 7
  %1639 = vperm.xlu0 %1638, %v22
  %v1640 = vpop.permute.xlu0 %1639
  %1641 = vset.pattern.permute.xlu0 7
  %1642 = vperm.xlu0 %1641, %v23
  %v1643 = vpop.permute.xlu0 %1642
  %1644 = vset.pattern.permute.xlu0 7
  %1645 = vperm.xlu0 %1644, %v24
  %v1646 = vpop.permute.xlu0 %1645
  %1647 = vset.pattern.permute.xlu0 7
  %1648 = vperm.xlu0 %1647, %v25
  %v1649 = vpop.permute.xlu0 %1648
  %1650 = vset.pattern.permute.xlu0 7
  %1651 = vperm.xlu0 %1650, %v26
  %v1652 = vpop.permute.xlu0 %1651
  %1653 = vset.pattern.permute.xlu0 7
  %1654 = vperm.xlu0 %1653, %v27
  %v1655 = vpop.permute.xlu0 %1654
  %1656 = vset.pattern.permute.xlu0 7
  %1657 = vperm.xlu0 %1656, %v28
  %v1658 = vpop.permute.xlu0 %1657
  %1659 = vset.pattern.permute.xlu0 7
  %1660 = vperm.xlu0 %1659, %v29
  %v1661 = vpop.permute.xlu0 %1660
  %1662 = vset.pattern.permute.xlu0 7
  %1663 = vperm.xlu0 %1662, %v30
  %v1664 = vpop.permute.xlu0 %1663
  %1665 = vset.pattern.permute.xlu0 7
  %1666 = vperm.xlu0 %1665, %v31
  %v1667 = vpop.permute.xlu0 %1666
  %1668 = vset.pattern.permute.xlu0 7
  %1669 = vperm.xlu0 %1668, %v32
  %v1670 = vpop.permute.xlu0 %1669
  %1671 = vset.pattern.permute.xlu0 7
  %1672 = vperm.xlu0 %1671, %v33
  %v1673 = vpop.permute.xlu0 %1672
  %1674 = vset.pattern.permute.xlu0 7
  %1675 = vperm.xlu0 %1674, %v34
  %v1676 = vpop.permute.xlu0 %1675
  %1677 = vset.pattern.permute.xlu0 7
  %1678 = vperm.xlu0 %1677, %v35
  %v1679 = vpop.permute.xlu0 %1678
  %1680 = vset.pattern.permute.xlu0 7
  %1681 = vperm.xlu0 %1680, %v36
  %v1682 = vpop.permute.xlu0 %1681
  %1683 = vset.pattern.permute.xlu0 7
  %1684 = vperm.xlu0 %1683, %v37
  %v1685 = vpop.permute.xlu0 %1684
  %1686 = vset.pattern.permute.xlu0 7
  %1687 = vperm.xlu0 %1686, %v38
  %v1688 = vpop.permute.xlu0 %1687
  %1689 = vset.pattern.permute.xlu0 7
  %1690 = vperm.xlu0 %1689, %v39
  %v1691 = vpop.permute.xlu0 %1690
  %1692 = vset.pattern.permute.xlu0 7
  %1693 = vperm.xlu0 %1692, %v40
  %v1694 = vpop.permute.xlu0 %1693
  %1695 = vset.pattern.permute.xlu0 7
  %1696 = vperm.xlu0 %1695, %v41
  %v1697 = vpop.permute.xlu0 %1696
  %1698 = vset.pattern.permute.xlu0 7
  %1699 = vperm.xlu0 %1698, %v42
  %v1700 = vpop.permute.xlu0 %1699
  %1701 = vset.pattern.permute.xlu0 7
  %1702 = vperm.xlu0 %1701, %v43
  %v1703 = vpop.permute.xlu0 %1702
  %1704 = vset.pattern.permute.xlu0 7
  %1705 = vperm.xlu0 %1704, %v44
  %v1706 = vpop.permute.xlu0 %1705
  %1707 = vset.pattern.permute.xlu0 7
  %1708 = vperm.xlu0 %1707, %v45
  %v1709 = vpop.permute.xlu0 %1708
  %1710 = vset.pattern.permute.xlu0 7
  %1711 = vperm.xlu0 %1710, %v46
  %v1712 = vpop.permute.xlu0 %1711
  %vm1713 = vcmp.eq.s32.totalorder %v1619, %v48
  %vm1714 = vcmp.eq.s32.totalorder %v1622, %v48
  %vm1715 = vcmp.eq.s32.totalorder %v1625, %v48
  %vm1716 = vcmp.eq.s32.totalorder %v1628, %v48
  %vm1717 = vcmp.eq.s32.totalorder %v1631, %v48
  %vm1718 = vcmp.eq.s32.totalorder %v1634, %v48
  %vm1719 = vcmp.eq.s32.totalorder %v1637, %v48
  %vm1720 = vcmp.eq.s32.totalorder %v1640, %v48
  %vm1721 = vcmp.eq.s32.totalorder %v1643, %v48
  %vm1722 = vcmp.eq.s32.totalorder %v1646, %v48
  %vm1723 = vcmp.eq.s32.totalorder %v1649, %v48
  %vm1724 = vcmp.eq.s32.totalorder %v1652, %v48
  %vm1725 = vcmp.eq.s32.totalorder %v1655, %v48
  %vm1726 = vcmp.eq.s32.totalorder %v1658, %v48
  %vm1727 = vcmp.eq.s32.totalorder %v1661, %v48
  %vm1728 = vcmp.eq.s32.totalorder %v1664, %v48
  %vm1729 = vcmp.eq.s32.totalorder %v1667, %v48
  %vm1730 = vcmp.eq.s32.totalorder %v1670, %v48
  %vm1731 = vcmp.eq.s32.totalorder %v1673, %v48
  %vm1732 = vcmp.eq.s32.totalorder %v1676, %v48
  %vm1733 = vcmp.eq.s32.totalorder %v1679, %v48
  %vm1734 = vcmp.eq.s32.totalorder %v1682, %v48
  %vm1735 = vcmp.eq.s32.totalorder %v1685, %v48
  %vm1736 = vcmp.eq.s32.totalorder %v1688, %v48
  %vm1737 = vcmp.eq.s32.totalorder %v1691, %v48
  %vm1738 = vcmp.eq.s32.totalorder %v1694, %v48
  %vm1739 = vcmp.eq.s32.totalorder %v1697, %v48
  %vm1740 = vcmp.eq.s32.totalorder %v1700, %v48
  %vm1741 = vcmp.eq.s32.totalorder %v1703, %v48
  %vm1742 = vcmp.eq.s32.totalorder %v1706, %v48
  %vm1743 = vcmp.eq.s32.totalorder %v1709, %v48
  %vm1744 = vcmp.eq.s32.totalorder %v1712, %v48
  %v1745 = vsel %vm1713, 1, 0
  %v1746 = vsel %vm1714, 1, 0
  %v1747 = vsel %vm1715, 1, 0
  %v1748 = vsel %vm1716, 1, 0
  %v1749 = vsel %vm1717, 1, 0
  %v1750 = vsel %vm1718, 1, 0
  %v1751 = vsel %vm1719, 1, 0
  %v1752 = vsel %vm1720, 1, 0
  %v1753 = vsel %vm1721, 1, 0
  %v1754 = vsel %vm1722, 1, 0
  %v1755 = vsel %vm1723, 1, 0
  %v1756 = vsel %vm1724, 1, 0
  %v1757 = vsel %vm1725, 1, 0
  %v1758 = vsel %vm1726, 1, 0
  %v1759 = vsel %vm1727, 1, 0
  %v1760 = vsel %vm1728, 1, 0
  %v1761 = vsel %vm1729, 1, 0
  %v1762 = vsel %vm1730, 1, 0
  %v1763 = vsel %vm1731, 1, 0
  %v1764 = vsel %vm1732, 1, 0
  %v1765 = vsel %vm1733, 1, 0
  %v1766 = vsel %vm1734, 1, 0
  %v1767 = vsel %vm1735, 1, 0
  %v1768 = vsel %vm1736, 1, 0
  %v1769 = vsel %vm1737, 1, 0
  %v1770 = vsel %vm1738, 1, 0
  %v1771 = vsel %vm1739, 1, 0
  %v1772 = vsel %vm1740, 1, 0
  %v1773 = vsel %vm1741, 1, 0
  %v1774 = vsel %vm1742, 1, 0
  %v1775 = vsel %vm1743, 1, 0
  %v1776 = vsel %vm1744, 1, 0
  %v1777 = vcvt.s32.f32 %v1745
  %v1778 = vcvt.s32.f32 %v1746
  %v1779 = vcvt.s32.f32 %v1747
  %v1780 = vcvt.s32.f32 %v1748
  %v1781 = vcvt.s32.f32 %v1749
  %v1782 = vcvt.s32.f32 %v1750
  %v1783 = vcvt.s32.f32 %v1751
  %v1784 = vcvt.s32.f32 %v1752
  %v1785 = vcvt.s32.f32 %v1753
  %v1786 = vcvt.s32.f32 %v1754
  %v1787 = vcvt.s32.f32 %v1755
  %v1788 = vcvt.s32.f32 %v1756
  %v1789 = vcvt.s32.f32 %v1757
  %v1790 = vcvt.s32.f32 %v1758
  %v1791 = vcvt.s32.f32 %v1759
  %v1792 = vcvt.s32.f32 %v1760
  %v1793 = vcvt.s32.f32 %v1761
  %v1794 = vcvt.s32.f32 %v1762
  %v1795 = vcvt.s32.f32 %v1763
  %v1796 = vcvt.s32.f32 %v1764
  %v1797 = vcvt.s32.f32 %v1765
  %v1798 = vcvt.s32.f32 %v1766
  %v1799 = vcvt.s32.f32 %v1767
  %v1800 = vcvt.s32.f32 %v1768
  %v1801 = vcvt.s32.f32 %v1769
  %v1802 = vcvt.s32.f32 %v1770
  %v1803 = vcvt.s32.f32 %v1771
  %v1804 = vcvt.s32.f32 %v1772
  %v1805 = vcvt.s32.f32 %v1773
  %v1806 = vcvt.s32.f32 %v1774
  %v1807 = vcvt.s32.f32 %v1775
  %v1808 = vcvt.s32.f32 %v1776
  %v1809 = vpack.c.bf16 %v1778, %v1777
  %v1810 = vpack.c.bf16 %v1780, %v1779
  %v1811 = vpack.c.bf16 %v1782, %v1781
  %v1812 = vpack.c.bf16 %v1784, %v1783
  %v1813 = vpack.c.bf16 %v1786, %v1785
  %v1814 = vpack.c.bf16 %v1788, %v1787
  %v1815 = vpack.c.bf16 %v1790, %v1789
  %v1816 = vpack.c.bf16 %v1792, %v1791
  %v1817 = vpack.c.bf16 %v1794, %v1793
  %v1818 = vpack.c.bf16 %v1796, %v1795
  %v1819 = vpack.c.bf16 %v1798, %v1797
  %v1820 = vpack.c.bf16 %v1800, %v1799
  %v1821 = vpack.c.bf16 %v1802, %v1801
  %v1822 = vpack.c.bf16 %v1804, %v1803
  %v1823 = vpack.c.bf16 %v1806, %v1805
  %v1824 = vpack.c.bf16 %v1808, %v1807
  %v1825 = vadd.bf16 %v1601, %v1809
  %v1826 = vadd.bf16 %v1602, %v1810
  %v1827 = vadd.bf16 %v1603, %v1811
  %v1828 = vadd.bf16 %v1604, %v1812
  %v1829 = vadd.bf16 %v1605, %v1813
  %v1830 = vadd.bf16 %v1606, %v1814
  %v1831 = vadd.bf16 %v1607, %v1815
  %v1832 = vadd.bf16 %v1608, %v1816
  %v1833 = vadd.bf16 %v1609, %v1817
  %v1834 = vadd.bf16 %v1610, %v1818
  %v1835 = vadd.bf16 %v1611, %v1819
  %v1836 = vadd.bf16 %v1612, %v1820
  %v1837 = vadd.bf16 %v1613, %v1821
  %v1838 = vadd.bf16 %v1614, %v1822
  %v1839 = vadd.bf16 %v1615, %v1823
  %v1840 = vadd.bf16 %v1616, %v1824
  %v1841 = vld [vmem:[%s1] sm:$0xf]
  %v1842 = vld [vmem:[%s1 + $0x4] sm:$0xf]
  %v1843 = vld [vmem:[%s1 + $0x8] sm:$0xf]
  %v1844 = vld [vmem:[%s1 + $0xc] sm:$0xf]
  %v1845 = vld [vmem:[%s1 + $0x10] sm:$0xf]
  %v1846 = vld [vmem:[%s1 + $0x14] sm:$0xf]
  %v1847 = vld [vmem:[%s1 + $0x18] sm:$0xf]
  %v1848 = vld [vmem:[%s1 + $0x1c] sm:$0xf]
  %v1849 = vld [vmem:[%s1 + $0x20] sm:$0xf]
  %v1850 = vld [vmem:[%s1 + $0x24] sm:$0xf]
  %v1851 = vld [vmem:[%s1 + $0x28] sm:$0xf]
  %v1852 = vld [vmem:[%s1 + $0x2c] sm:$0xf]
  %v1853 = vld [vmem:[%s1 + $0x30] sm:$0xf]
  %v1854 = vld [vmem:[%s1 + $0x34] sm:$0xf]
  %v1855 = vld [vmem:[%s1 + $0x38] sm:$0xf]
  %v1856 = vld [vmem:[%s1 + $0x3c] sm:$0xf]
  %v1857 = vld [vmem:[%s2] sm:$0x1]
  %v1859 = vlaneseq
  %v1860 = vshrl.u32 %v1859, 7
  %v1861 = vsub.s32 0, %v1860
  %v1862 = vrot.slane %v1857, %v1861
  %v1880 = vunpack.c.l.b16 %v1841
  %v1881 = vunpack.c.l.b16 %v1842
  %v1882 = vunpack.c.l.b16 %v1843
  %v1883 = vunpack.c.l.b16 %v1844
  %v1884 = vunpack.c.l.b16 %v1845
  %v1885 = vunpack.c.l.b16 %v1846
  %v1886 = vunpack.c.l.b16 %v1847
  %v1887 = vunpack.c.l.b16 %v1848
  %v1888 = vunpack.c.l.b16 %v1849
  %v1889 = vunpack.c.l.b16 %v1850
  %v1890 = vunpack.c.l.b16 %v1851
  %v1891 = vunpack.c.l.b16 %v1852
  %v1892 = vunpack.c.l.b16 %v1853
  %v1893 = vunpack.c.l.b16 %v1854
  %v1894 = vunpack.c.l.b16 %v1855
  %v1895 = vunpack.c.l.b16 %v1856
  %v1896 = vpack.c.b16 %v1881, %v1880
  %v1897 = vpack.c.b16 %v1883, %v1882
  %v1898 = vpack.c.b16 %v1885, %v1884
  %v1899 = vpack.c.b16 %v1887, %v1886
  %v1900 = vpack.c.b16 %v1889, %v1888
  %v1901 = vpack.c.b16 %v1891, %v1890
  %v1902 = vpack.c.b16 %v1893, %v1892
  %v1903 = vpack.c.b16 %v1895, %v1894
  %1912 = vmatprep.subr.bf16.mxu0 0
  %1913 = vmatpush1.bf16.msra.mxu0 %v1896
  %1914 = vmatprep.subr.bf16.mxu0 0
  %1915 = vmatpush1.bf16.msra.mxu0 %v1897
  %1916 = vmatprep.subr.bf16.mxu0 0
  %1917 = vmatpush1.bf16.msra.mxu0 %v1898
  %1918 = vmatprep.subr.bf16.mxu0 0
  %1919 = vmatpush1.bf16.msra.mxu0 %v1899
  %1920 = vmatprep.subr.bf16.mxu0 0
  %1921 = vmatpush1.bf16.msra.mxu0 %v1900
  %1922 = vmatprep.subr.bf16.mxu0 0
  %1923 = vmatpush1.bf16.msra.mxu0 %v1901
  %1924 = vmatprep.subr.bf16.mxu0 0
  %1925 = vmatpush1.bf16.msra.mxu0 %v1902
  %1926 = vmatprep.subr.bf16.mxu0 0
  %1927 = vmatpush1.bf16.msra.mxu0 %v1903
  %1928 = vmatprep.subr.bf16.mxu0 0
  %1929 = vmatpush1.bf16.msra.mxu0 0
  %1930 = vmatprep.subr.bf16.mxu0 0
  %1931 = vmatpush1.bf16.msra.mxu0 0
  %1932 = vmatprep.subr.bf16.mxu0 0
  %1933 = vmatpush1.bf16.msra.mxu0 0
  %1934 = vmatprep.subr.bf16.mxu0 0
  %1935 = vmatpush1.bf16.msra.mxu0 0
  %1936 = vmatprep.subr.bf16.mxu0 0
  %1937 = vmatpush1.bf16.msra.mxu0 0
  %1938 = vmatprep.subr.bf16.mxu0 0
  %1939 = vmatpush1.bf16.msra.mxu0 0
  %1940 = vmatprep.subr.bf16.mxu0 0
  %1941 = vmatpush1.bf16.msra.mxu0 0
  %1942 = vmatprep.subr.bf16.mxu0 0
  %1943 = vmatpush1.bf16.msra.mxu0 0
  %1944 = vmatprep.mubr.bf16.mxu0 0
  %1945 = vmatmul.mubr.bf16.gmra.mrb[0].mxu0 %v1825
  %v1946 = vpop.f32.mrb[0].mxu0
  %v1947 = vadd.f32 %v1862, %v1946
  %v1948 = vpop.f32.mrb[0].mxu0
  %v1949 = vpop.f32.mrb[0].mxu0
  %v1950 = vadd.f32 %v1862, %v1949
  %v1951 = vpop.f32.mrb[0].mxu0
  %1952 = vmatprep.mubr.bf16.mxu0 0
  %1953 = vmatmul.mubr.bf16.gmra.mrb[0].mxu0 %v1826
  %v1954 = vpop.f32.mrb[0].mxu0
  %v1955 = vadd.f32 %v1862, %v1954
  %v1956 = vpop.f32.mrb[0].mxu0
  %v1957 = vpop.f32.mrb[0].mxu0
  %v1958 = vadd.f32 %v1862, %v1957
  %v1959 = vpop.f32.mrb[0].mxu0
  %1960 = vmatprep.mubr.bf16.mxu0 0
  %1961 = vmatmul.mubr.bf16.gmra.mrb[0].mxu0 %v1827
  %v1962 = vpop.f32.mrb[0].mxu0
  %v1963 = vadd.f32 %v1862, %v1962
  %v1964 = vpop.f32.mrb[0].mxu0
  %v1965 = vpop.f32.mrb[0].mxu0
  %v1966 = vadd.f32 %v1862, %v1965
  %v1967 = vpop.f32.mrb[0].mxu0
  %1968 = vmatprep.mubr.bf16.mxu0 0
  %1969 = vmatmul.mubr.bf16.gmra.mrb[0].mxu0 %v1828
  %v1970 = vpop.f32.mrb[0].mxu0
  %v1971 = vadd.f32 %v1862, %v1970
  %v1972 = vpop.f32.mrb[0].mxu0
  %v1973 = vpop.f32.mrb[0].mxu0
  %v1974 = vadd.f32 %v1862, %v1973
  %v1975 = vpop.f32.mrb[0].mxu0
  %1976 = vmatprep.mubr.bf16.mxu0 0
  %1977 = vmatmul.mubr.bf16.gmra.mrb[0].mxu0 %v1829
  %v1978 = vpop.f32.mrb[0].mxu0
  %v1979 = vadd.f32 %v1862, %v1978
  %v1980 = vpop.f32.mrb[0].mxu0
  %v1981 = vpop.f32.mrb[0].mxu0
  %v1982 = vadd.f32 %v1862, %v1981
  %v1983 = vpop.f32.mrb[0].mxu0
  %1984 = vmatprep.mubr.bf16.mxu0 0
  %1985 = vmatmul.mubr.bf16.gmra.mrb[0].mxu0 %v1830
  %v1986 = vpop.f32.mrb[0].mxu0
  %v1987 = vadd.f32 %v1862, %v1986
  %v1988 = vpop.f32.mrb[0].mxu0
  %v1989 = vpop.f32.mrb[0].mxu0
  %v1990 = vadd.f32 %v1862, %v1989
  %v1991 = vpop.f32.mrb[0].mxu0
  %1992 = vmatprep.mubr.bf16.mxu0 0
  %1993 = vmatmul.mubr.bf16.gmra.mrb[0].mxu0 %v1831
  %v1994 = vpop.f32.mrb[0].mxu0
  %v1995 = vadd.f32 %v1862, %v1994
  %v1996 = vpop.f32.mrb[0].mxu0
  %v1997 = vpop.f32.mrb[0].mxu0
  %v1998 = vadd.f32 %v1862, %v1997
  %v1999 = vpop.f32.mrb[0].mxu0
  %2000 = vmatprep.mubr.bf16.mxu0 0
  %2001 = vmatmul.mubr.bf16.gmra.mrb[0].mxu0 %v1832
  %v2002 = vpop.f32.mrb[0].mxu0
  %v2003 = vadd.f32 %v1862, %v2002
  %v2004 = vpop.f32.mrb[0].mxu0
  %v2005 = vpop.f32.mrb[0].mxu0
  %v2006 = vadd.f32 %v1862, %v2005
  %v2007 = vpop.f32.mrb[0].mxu0
  %2008 = vmatprep.mubr.bf16.mxu0 0
  %2009 = vmatmul.mubr.bf16.gmra.mrb[0].mxu0 %v1833
  %v2010 = vpop.f32.mrb[0].mxu0
  %v2011 = vadd.f32 %v1862, %v2010
  %v2012 = vpop.f32.mrb[0].mxu0
  %v2013 = vpop.f32.mrb[0].mxu0
  %v2014 = vadd.f32 %v1862, %v2013
  %v2015 = vpop.f32.mrb[0].mxu0
  %2016 = vmatprep.mubr.bf16.mxu0 0
  %2017 = vmatmul.mubr.bf16.gmra.mrb[0].mxu0 %v1834
  %v2018 = vpop.f32.mrb[0].mxu0
  %v2019 = vadd.f32 %v1862, %v2018
  %v2020 = vpop.f32.mrb[0].mxu0
  %v2021 = vpop.f32.mrb[0].mxu0
  %v2022 = vadd.f32 %v1862, %v2021
  %v2023 = vpop.f32.mrb[0].mxu0
  %2024 = vmatprep.mubr.bf16.mxu0 0
  %2025 = vmatmul.mubr.bf16.gmra.mrb[0].mxu0 %v1835
  %v2026 = vpop.f32.mrb[0].mxu0
  %v2027 = vadd.f32 %v1862, %v2026
  %v2028 = vpop.f32.mrb[0].mxu0
  %v2029 = vpop.f32.mrb[0].mxu0
  %v2030 = vadd.f32 %v1862, %v2029
  %v2031 = vpop.f32.mrb[0].mxu0
  %2032 = vmatprep.mubr.bf16.mxu0 0
  %2033 = vmatmul.mubr.bf16.gmra.mrb[0].mxu0 %v1836
  %v2034 = vpop.f32.mrb[0].mxu0
  %v2035 = vadd.f32 %v1862, %v2034
  %v2036 = vpop.f32.mrb[0].mxu0
  %v2037 = vpop.f32.mrb[0].mxu0
  %v2038 = vadd.f32 %v1862, %v2037
  %v2039 = vpop.f32.mrb[0].mxu0
  %2040 = vmatprep.mubr.bf16.mxu0 0
  %2041 = vmatmul.mubr.bf16.gmra.mrb[0].mxu0 %v1837
  %v2042 = vpop.f32.mrb[0].mxu0
  %v2043 = vadd.f32 %v1862, %v2042
  %v2044 = vpop.f32.mrb[0].mxu0
  %v2045 = vpop.f32.mrb[0].mxu0
  %v2046 = vadd.f32 %v1862, %v2045
  %v2047 = vpop.f32.mrb[0].mxu0
  %2048 = vmatprep.mubr.bf16.mxu0 0
  %2049 = vmatmul.mubr.bf16.gmra.mrb[0].mxu0 %v1838
  %v2050 = vpop.f32.mrb[0].mxu0
  %v2051 = vadd.f32 %v1862, %v2050
  %v2052 = vpop.f32.mrb[0].mxu0
  %v2053 = vpop.f32.mrb[0].mxu0
  %v2054 = vadd.f32 %v1862, %v2053
  %v2055 = vpop.f32.mrb[0].mxu0
  %2056 = vmatprep.mubr.bf16.mxu0 0
  %2057 = vmatmul.mubr.bf16.gmra.mrb[0].mxu0 %v1839
  %v2058 = vpop.f32.mrb[0].mxu0
  %v2059 = vadd.f32 %v1862, %v2058
  %v2060 = vpop.f32.mrb[0].mxu0
  %v2061 = vpop.f32.mrb[0].mxu0
  %v2062 = vadd.f32 %v1862, %v2061
  %v2063 = vpop.f32.mrb[0].mxu0
  %2064 = vmatprep.mubr.bf16.mxu0 0
  %2065 = vmatmul.mubr.bf16.gmra.mrb[0].mxu0 %v1840
  %v2066 = vpop.f32.mrb[0].mxu0
  %v2067 = vadd.f32 %v1862, %v2066
  %v2068 = vpop.f32.mrb[0].mxu0
  %v2069 = vpop.f32.mrb[0].mxu0
  %v2070 = vadd.f32 %v1862, %v2069
  %v2071 = vpop.f32.mrb[0].mxu0
  %2072 = vdwg.mxu0
  %2073 = vmax.xlane.f32.xlu0 %v1947
  %v2074 = vpop.xlane.xlu0 %2073
  %2075 = vmax.xlane.f32.xlu0 %v1950
  %v2076 = vpop.xlane.xlu0 %2075
  %2077 = vmax.xlane.f32.xlu0 %v1955
  %v2078 = vpop.xlane.xlu0 %2077
  %2079 = vmax.xlane.f32.xlu0 %v1958
  %v2080 = vpop.xlane.xlu0 %2079
  %2081 = vmax.xlane.f32.xlu0 %v1963
  %v2082 = vpop.xlane.xlu0 %2081
  %2083 = vmax.xlane.f32.xlu0 %v1966
  %v2084 = vpop.xlane.xlu0 %2083
  %2085 = vmax.xlane.f32.xlu0 %v1971
  %v2086 = vpop.xlane.xlu0 %2085
  %2087 = vmax.xlane.f32.xlu0 %v1974
  %v2088 = vpop.xlane.xlu0 %2087
  %2089 = vmax.xlane.f32.xlu0 %v1979
  %v2090 = vpop.xlane.xlu0 %2089
  %2091 = vmax.xlane.f32.xlu0 %v1982
  %v2092 = vpop.xlane.xlu0 %2091
  %2093 = vmax.xlane.f32.xlu0 %v1987
  %v2094 = vpop.xlane.xlu0 %2093
  %2095 = vmax.xlane.f32.xlu0 %v1990
  %v2096 = vpop.xlane.xlu0 %2095
  %2097 = vmax.xlane.f32.xlu0 %v1995
  %v2098 = vpop.xlane.xlu0 %2097
  %2099 = vmax.xlane.f32.xlu0 %v1998
  %v2100 = vpop.xlane.xlu0 %2099
  %2101 = vmax.xlane.f32.xlu0 %v2003
  %v2102 = vpop.xlane.xlu0 %2101
  %2103 = vmax.xlane.f32.xlu0 %v2006
  %v2104 = vpop.xlane.xlu0 %2103
  %2105 = vmax.xlane.f32.xlu0 %v2011
  %v2106 = vpop.xlane.xlu0 %2105
  %2107 = vmax.xlane.f32.xlu0 %v2014
  %v2108 = vpop.xlane.xlu0 %2107
  %2109 = vmax.xlane.f32.xlu0 %v2019
  %v2110 = vpop.xlane.xlu0 %2109
  %2111 = vmax.xlane.f32.xlu0 %v2022
  %v2112 = vpop.xlane.xlu0 %2111
  %2113 = vmax.xlane.f32.xlu0 %v2027
  %v2114 = vpop.xlane.xlu0 %2113
  %2115 = vmax.xlane.f32.xlu0 %v2030
  %v2116 = vpop.xlane.xlu0 %2115
  %2117 = vmax.xlane.f32.xlu0 %v2035
  %v2118 = vpop.xlane.xlu0 %2117
  %2119 = vmax.xlane.f32.xlu0 %v2038
  %v2120 = vpop.xlane.xlu0 %2119
  %2121 = vmax.xlane.f32.xlu0 %v2043
  %v2122 = vpop.xlane.xlu0 %2121
  %2123 = vmax.xlane.f32.xlu0 %v2046
  %v2124 = vpop.xlane.xlu0 %2123
  %2125 = vmax.xlane.f32.xlu0 %v2051
  %v2126 = vpop.xlane.xlu0 %2125
  %2127 = vmax.xlane.f32.xlu0 %v2054
  %v2128 = vpop.xlane.xlu0 %2127
  %2129 = vmax.xlane.f32.xlu0 %v2059
  %v2130 = vpop.xlane.xlu0 %2129
  %2131 = vmax.xlane.f32.xlu0 %v2062
  %v2132 = vpop.xlane.xlu0 %2131
  %2133 = vmax.xlane.f32.xlu0 %v2067
  %v2134 = vpop.xlane.xlu0 %2133
  %2135 = vmax.xlane.f32.xlu0 %v2070
  %v2136 = vpop.xlane.xlu0 %2135
  %v2137 = vsub.f32 %v1947, %v2074
  %v2138 = vsub.f32 %v1950, %v2076
  %v2139 = vsub.f32 %v1955, %v2078
  %v2140 = vsub.f32 %v1958, %v2080
  %v2141 = vsub.f32 %v1963, %v2082
  %v2142 = vsub.f32 %v1966, %v2084
  %v2143 = vsub.f32 %v1971, %v2086
  %v2144 = vsub.f32 %v1974, %v2088
  %v2145 = vsub.f32 %v1979, %v2090
  %v2146 = vsub.f32 %v1982, %v2092
  %v2147 = vsub.f32 %v1987, %v2094
  %v2148 = vsub.f32 %v1990, %v2096
  %v2149 = vsub.f32 %v1995, %v2098
  %v2150 = vsub.f32 %v1998, %v2100
  %v2151 = vsub.f32 %v2003, %v2102
  %v2152 = vsub.f32 %v2006, %v2104
  %v2153 = vsub.f32 %v2011, %v2106
  %v2154 = vsub.f32 %v2014, %v2108
  %v2155 = vsub.f32 %v2019, %v2110
  %v2156 = vsub.f32 %v2022, %v2112
  %v2157 = vsub.f32 %v2027, %v2114
  %v2158 = vsub.f32 %v2030, %v2116
  %v2159 = vsub.f32 %v2035, %v2118
  %v2160 = vsub.f32 %v2038, %v2120
  %v2161 = vsub.f32 %v2043, %v2122
  %v2162 = vsub.f32 %v2046, %v2124
  %v2163 = vsub.f32 %v2051, %v2126
  %v2164 = vsub.f32 %v2054, %v2128
  %v2165 = vsub.f32 %v2059, %v2130
  %v2166 = vsub.f32 %v2062, %v2132
  %v2167 = vsub.f32 %v2067, %v2134
  %v2168 = vsub.f32 %v2070, %v2136
  %v2169 = vmul.f32 %v2137, 1.442695
  %v2170 = vpow.pop %v2169
  %v2171 = vmul.f32 %v2138, 1.442695
  %v2172 = vpow.pop %v2171
  %v2173 = vmul.f32 %v2139, 1.442695
  %v2174 = vpow.pop %v2173
  %v2175 = vmul.f32 %v2140, 1.442695
  %v2176 = vpow.pop %v2175
  %v2177 = vmul.f32 %v2141, 1.442695
  %v2178 = vpow.pop %v2177
  %v2179 = vmul.f32 %v2142, 1.442695
  %v2180 = vpow.pop %v2179
  %v2181 = vmul.f32 %v2143, 1.442695
  %v2182 = vpow.pop %v2181
  %v2183 = vmul.f32 %v2144, 1.442695
  %v2184 = vpow.pop %v2183
  %v2185 = vmul.f32 %v2145, 1.442695
  %v2186 = vpow.pop %v2185
  %v2187 = vmul.f32 %v2146, 1.442695
  %v2188 = vpow.pop %v2187
  %v2189 = vmul.f32 %v2147, 1.442695
  %v2190 = vpow.pop %v2189
  %v2191 = vmul.f32 %v2148, 1.442695
  %v2192 = vpow.pop %v2191
  %v2193 = vmul.f32 %v2149, 1.442695
  %v2194 = vpow.pop %v2193
  %v2195 = vmul.f32 %v2150, 1.442695
  %v2196 = vpow.pop %v2195
  %v2197 = vmul.f32 %v2151, 1.442695
  %v2198 = vpow.pop %v2197
  %v2199 = vmul.f32 %v2152, 1.442695
  %v2200 = vpow.pop %v2199
  %v2201 = vmul.f32 %v2153, 1.442695
  %v2202 = vpow.pop %v2201
  %v2203 = vmul.f32 %v2154, 1.442695
  %v2204 = vpow.pop %v2203
  %v2205 = vmul.f32 %v2155, 1.442695
  %v2206 = vpow.pop %v2205
  %v2207 = vmul.f32 %v2156, 1.442695
  %v2208 = vpow.pop %v2207
  %v2209 = vmul.f32 %v2157, 1.442695
  %v2210 = vpow.pop %v2209
  %v2211 = vmul.f32 %v2158, 1.442695
  %v2212 = vpow.pop %v2211
  %v2213 = vmul.f32 %v2159, 1.442695
  %v2214 = vpow.pop %v2213
  %v2215 = vmul.f32 %v2160, 1.442695
  %v2216 = vpow.pop %v2215
  %v2217 = vmul.f32 %v2161, 1.442695
  %v2218 = vpow.pop %v2217
  %v2219 = vmul.f32 %v2162, 1.442695
  %v2220 = vpow.pop %v2219
  %v2221 = vmul.f32 %v2163, 1.442695
  %v2222 = vpow.pop %v2221
  %v2223 = vmul.f32 %v2164, 1.442695
  %v2224 = vpow.pop %v2223
  %v2225 = vmul.f32 %v2165, 1.442695
  %v2226 = vpow.pop %v2225
  %v2227 = vmul.f32 %v2166, 1.442695
  %v2228 = vpow.pop %v2227
  %v2229 = vmul.f32 %v2167, 1.442695
  %v2230 = vpow.pop %v2229
  %v2231 = vmul.f32 %v2168, 1.442695
  %v2232 = vpow.pop %v2231
  %2233 = vadd.xlane.f32.xlu0 %v2170
  %v2234 = vpop.xlane.xlu0 %2233
  %2235 = vadd.xlane.f32.xlu0 %v2172
  %v2236 = vpop.xlane.xlu0 %2235
  %2237 = vadd.xlane.f32.xlu0 %v2174
  %v2238 = vpop.xlane.xlu0 %2237
  %2239 = vadd.xlane.f32.xlu0 %v2176
  %v2240 = vpop.xlane.xlu0 %2239
  %2241 = vadd.xlane.f32.xlu0 %v2178
  %v2242 = vpop.xlane.xlu0 %2241
  %2243 = vadd.xlane.f32.xlu0 %v2180
  %v2244 = vpop.xlane.xlu0 %2243
  %2245 = vadd.xlane.f32.xlu0 %v2182
  %v2246 = vpop.xlane.xlu0 %2245
  %2247 = vadd.xlane.f32.xlu0 %v2184
  %v2248 = vpop.xlane.xlu0 %2247
  %2249 = vadd.xlane.f32.xlu0 %v2186
  %v2250 = vpop.xlane.xlu0 %2249
  %2251 = vadd.xlane.f32.xlu0 %v2188
  %v2252 = vpop.xlane.xlu0 %2251
  %2253 = vadd.xlane.f32.xlu0 %v2190
  %v2254 = vpop.xlane.xlu0 %2253
  %2255 = vadd.xlane.f32.xlu0 %v2192
  %v2256 = vpop.xlane.xlu0 %2255
  %2257 = vadd.xlane.f32.xlu0 %v2194
  %v2258 = vpop.xlane.xlu0 %2257
  %2259 = vadd.xlane.f32.xlu0 %v2196
  %v2260 = vpop.xlane.xlu0 %2259
  %2261 = vadd.xlane.f32.xlu0 %v2198
  %v2262 = vpop.xlane.xlu0 %2261
  %2263 = vadd.xlane.f32.xlu0 %v2200
  %v2264 = vpop.xlane.xlu0 %2263
  %2265 = vadd.xlane.f32.xlu0 %v2202
  %v2266 = vpop.xlane.xlu0 %2265
  %2267 = vadd.xlane.f32.xlu0 %v2204
  %v2268 = vpop.xlane.xlu0 %2267
  %2269 = vadd.xlane.f32.xlu0 %v2206
  %v2270 = vpop.xlane.xlu0 %2269
  %2271 = vadd.xlane.f32.xlu0 %v2208
  %v2272 = vpop.xlane.xlu0 %2271
  %2273 = vadd.xlane.f32.xlu0 %v2210
  %v2274 = vpop.xlane.xlu0 %2273
  %2275 = vadd.xlane.f32.xlu0 %v2212
  %v2276 = vpop.xlane.xlu0 %2275
  %2277 = vadd.xlane.f32.xlu0 %v2214
  %v2278 = vpop.xlane.xlu0 %2277
  %2279 = vadd.xlane.f32.xlu0 %v2216
  %v2280 = vpop.xlane.xlu0 %2279
  %2281 = vadd.xlane.f32.xlu0 %v2218
  %v2282 = vpop.xlane.xlu0 %2281
  %2283 = vadd.xlane.f32.xlu0 %v2220
  %v2284 = vpop.xlane.xlu0 %2283
  %2285 = vadd.xlane.f32.xlu0 %v2222
  %v2286 = vpop.xlane.xlu0 %2285
  %2287 = vadd.xlane.f32.xlu0 %v2224
  %v2288 = vpop.xlane.xlu0 %2287
  %2289 = vadd.xlane.f32.xlu0 %v2226
  %v2290 = vpop.xlane.xlu0 %2289
  %2291 = vadd.xlane.f32.xlu0 %v2228
  %v2292 = vpop.xlane.xlu0 %2291
  %2293 = vadd.xlane.f32.xlu0 %v2230
  %v2294 = vpop.xlane.xlu0 %2293
  %2295 = vadd.xlane.f32.xlu0 %v2232
  %v2296 = vpop.xlane.xlu0 %2295
  %v2297 = vlog2.pop %v2234
  %v2298 = vmul.f32 %v2297, 0.6931472
  %v2299 = vlog2.pop %v2236
  %v2300 = vmul.f32 %v2299, 0.6931472
  %v2301 = vlog2.pop %v2238
  %v2302 = vmul.f32 %v2301, 0.6931472
  %v2303 = vlog2.pop %v2240
  %v2304 = vmul.f32 %v2303, 0.6931472
  %v2305 = vlog2.pop %v2242
  %v2306 = vmul.f32 %v2305, 0.6931472
  %v2307 = vlog2.pop %v2244
  %v2308 = vmul.f32 %v2307, 0.6931472
  %v2309 = vlog2.pop %v2246
  %v2310 = vmul.f32 %v2309, 0.6931472
  %v2311 = vlog2.pop %v2248
  %v2312 = vmul.f32 %v2311, 0.6931472
  %v2313 = vlog2.pop %v2250
  %v2314 = vmul.f32 %v2313, 0.6931472
  %v2315 = vlog2.pop %v2252
  %v2316 = vmul.f32 %v2315, 0.6931472
  %v2317 = vlog2.pop %v2254
  %v2318 = vmul.f32 %v2317, 0.6931472
  %v2319 = vlog2.pop %v2256
  %v2320 = vmul.f32 %v2319, 0.6931472
  %v2321 = vlog2.pop %v2258
  %v2322 = vmul.f32 %v2321, 0.6931472
  %v2323 = vlog2.pop %v2260
  %v2324 = vmul.f32 %v2323, 0.6931472
  %v2325 = vlog2.pop %v2262
  %v2326 = vmul.f32 %v2325, 0.6931472
  %v2327 = vlog2.pop %v2264
  %v2328 = vmul.f32 %v2327, 0.6931472
  %v2329 = vlog2.pop %v2266
  %v2330 = vmul.f32 %v2329, 0.6931472
  %v2331 = vlog2.pop %v2268
  %v2332 = vmul.f32 %v2331, 0.6931472
  %v2333 = vlog2.pop %v2270
  %v2334 = vmul.f32 %v2333, 0.6931472
  %v2335 = vlog2.pop %v2272
  %v2336 = vmul.f32 %v2335, 0.6931472
  %v2337 = vlog2.pop %v2274
  %v2338 = vmul.f32 %v2337, 0.6931472
  %v2339 = vlog2.pop %v2276
  %v2340 = vmul.f32 %v2339, 0.6931472
  %v2341 = vlog2.pop %v2278
  %v2342 = vmul.f32 %v2341, 0.6931472
  %v2343 = vlog2.pop %v2280
  %v2344 = vmul.f32 %v2343, 0.6931472
  %v2345 = vlog2.pop %v2282
  %v2346 = vmul.f32 %v2345, 0.6931472
  %v2347 = vlog2.pop %v2284
  %v2348 = vmul.f32 %v2347, 0.6931472
  %v2349 = vlog2.pop %v2286
  %v2350 = vmul.f32 %v2349, 0.6931472
  %v2351 = vlog2.pop %v2288
  %v2352 = vmul.f32 %v2351, 0.6931472
  %v2353 = vlog2.pop %v2290
  %v2354 = vmul.f32 %v2353, 0.6931472
  %v2355 = vlog2.pop %v2292
  %v2356 = vmul.f32 %v2355, 0.6931472
  %v2357 = vlog2.pop %v2294
  %v2358 = vmul.f32 %v2357, 0.6931472
  %v2359 = vlog2.pop %v2296
  %v2360 = vmul.f32 %v2359, 0.6931472
  %v2361 = vsub.f32 %v2137, %v2298
  %v2362 = vsub.f32 %v2138, %v2300
  %v2363 = vsub.f32 %v2139, %v2302
  %v2364 = vsub.f32 %v2140, %v2304
  %v2365 = vsub.f32 %v2141, %v2306
  %v2366 = vsub.f32 %v2142, %v2308
  %v2367 = vsub.f32 %v2143, %v2310
  %v2368 = vsub.f32 %v2144, %v2312
  %v2369 = vsub.f32 %v2145, %v2314
  %v2370 = vsub.f32 %v2146, %v2316
  %v2371 = vsub.f32 %v2147, %v2318
  %v2372 = vsub.f32 %v2148, %v2320
  %v2373 = vsub.f32 %v2149, %v2322
  %v2374 = vsub.f32 %v2150, %v2324
  %v2375 = vsub.f32 %v2151, %v2326
  %v2376 = vsub.f32 %v2152, %v2328
  %v2377 = vsub.f32 %v2153, %v2330
  %v2378 = vsub.f32 %v2154, %v2332
  %v2379 = vsub.f32 %v2155, %v2334
  %v2380 = vsub.f32 %v2156, %v2336
  %v2381 = vsub.f32 %v2157, %v2338
  %v2382 = vsub.f32 %v2158, %v2340
  %v2383 = vsub.f32 %v2159, %v2342
  %v2384 = vsub.f32 %v2160, %v2344
  %v2385 = vsub.f32 %v2161, %v2346
  %v2386 = vsub.f32 %v2162, %v2348
  %v2387 = vsub.f32 %v2163, %v2350
  %v2388 = vsub.f32 %v2164, %v2352
  %v2389 = vsub.f32 %v2165, %v2354
  %v2390 = vsub.f32 %v2166, %v2356
  %v2391 = vsub.f32 %v2167, %v2358
  %v2392 = vsub.f32 %v2168, %v2360
  %2393 = vst [vmem:[%s3] sm:$0xff] %v2361
  %2394 = vst [vmem:[%s3 + $0x8] sm:$0xff] %v2362
  %2395 = vst [vmem:[%s3 + $0x10] sm:$0xff] %v2363
  %2396 = vst [vmem:[%s3 + $0x18] sm:$0xff] %v2364
  %2397 = vst [vmem:[%s3 + $0x20] sm:$0xff] %v2365
  %2398 = vst [vmem:[%s3 + $0x28] sm:$0xff] %v2366
  %2399 = vst [vmem:[%s3 + $0x30] sm:$0xff] %v2367
  %2400 = vst [vmem:[%s3 + $0x38] sm:$0xff] %v2368
  %2401 = vst [vmem:[%s3 + $0x40] sm:$0xff] %v2369
  %2402 = vst [vmem:[%s3 + $0x48] sm:$0xff] %v2370
  %2403 = vst [vmem:[%s3 + $0x50] sm:$0xff] %v2371
  %2404 = vst [vmem:[%s3 + $0x58] sm:$0xff] %v2372
  %2405 = vst [vmem:[%s3 + $0x60] sm:$0xff] %v2373
  %2406 = vst [vmem:[%s3 + $0x68] sm:$0xff] %v2374
  %2407 = vst [vmem:[%s3 + $0x70] sm:$0xff] %v2375
  %2408 = vst [vmem:[%s3 + $0x78] sm:$0xff] %v2376
  %2409 = vst [vmem:[%s3 + $0x80] sm:$0xff] %v2377
  %2410 = vst [vmem:[%s3 + $0x88] sm:$0xff] %v2378
  %2411 = vst [vmem:[%s3 + $0x90] sm:$0xff] %v2379
  %2412 = vst [vmem:[%s3 + $0x98] sm:$0xff] %v2380
  %2413 = vst [vmem:[%s3 + $0xa0] sm:$0xff] %v2381
  %2414 = vst [vmem:[%s3 + $0xa8] sm:$0xff] %v2382
  %2415 = vst [vmem:[%s3 + $0xb0] sm:$0xff] %v2383
  %2416 = vst [vmem:[%s3 + $0xb8] sm:$0xff] %v2384
  %2417 = vst [vmem:[%s3 + $0xc0] sm:$0xff] %v2385
  %2418 = vst [vmem:[%s3 + $0xc8] sm:$0xff] %v2386
  %2419 = vst [vmem:[%s3 + $0xd0] sm:$0xff] %v2387
  %2420 = vst [vmem:[%s3 + $0xd8] sm:$0xff] %v2388
  %2421 = vst [vmem:[%s3 + $0xe0] sm:$0xff] %v2389
  %2422 = vst [vmem:[%s3 + $0xe8] sm:$0xff] %v2390
  %2423 = vst [vmem:[%s3 + $0xf0] sm:$0xff] %v2391
  %2424 = vst [vmem:[%s3 + $0xf8] sm:$0xff] %v2392
  // Predicated region
  $region14: #{forward.1} parent=0 // pred_check
    _
  $region15: #{forward.1} parent=0 // pred_check_branch
    %2426 = sbr.rel (0) target = $region17
  $region16: #{forward.1} parent=0 // pred_region
    _
  $region17: #{forward.1} parent=0 // pred_fallthru
    _
  // Predicated region
  $region18: #{forward.1} parent=0 // pred_check
    _
  $region19: #{forward.1} parent=0 // pred_check_branch
    %2428 = sbr.rel (0) target = $region21
  $region20: #{forward.1} parent=0 // pred_region
    _
  $region21: #{forward.1} parent=0 // pred_fallthru
    _

</llo_original>
